<compile_context>
chip_gen: v7x
topology: tpu7x:2x2x1
jax: 0.10.0
libtpu: 0.0.40
codegen_flags: <defaults>
</compile_context>

<pallas_src>
import functools
import math

import jax
import jax.numpy as jnp
from jax.experimental import pallas as pl
from jax.experimental.pallas import tpu as pltpu


# ---------------------------------------------------------------------------
# Kernel
# ---------------------------------------------------------------------------
def transformer_kernel(x_ref, pe_ref, we_ref, be_ref,
                       wqkv_ref, bqkv_ref, wo_ref,
                       w1_ref, b1_ref, w2_ref, small_ref,
                       wd_ref, bd_ref,
                       out_ref, h_ref, *, d_model):
    f32, bf16 = jnp.float32, jnp.bfloat16
    eps = 1e-5
    layer = pl.program_id(1)
    n_layers = pl.num_programs(1)
    nb, S, dp = h_ref.shape
    inv_d = 1.0 / d_model
    inv_sqrt_d = 1.0 / math.sqrt(d_model)

    def layer_norm(z, w, b):
        # Padded lanes of z are provably zero (all weight/bias/PE padding is 0),
        # so plain lane sums give statistics over the true d_model columns;
        # E[x^2]-mu^2 form avoids any lane mask.  gamma/beta padding is zero, so
        # the output's padded lanes stay zero as well.
        mu = jnp.sum(z, axis=-1, keepdims=True) * inv_d
        var = jnp.sum(z * z, axis=-1, keepdims=True) * inv_d - mu * mu
        return (z - mu) * jax.lax.rsqrt(var + eps) * w + b

    # --- encoder Linear * sqrt(d_model) + positional encoding (layer step 0) ---
    @pl.when(layer == 0)
    def _():
        xb = x_ref[...]
        x2 = xb.reshape(nb * S, xb.shape[-1]).astype(bf16)
        h0 = jnp.dot(x2, we_ref[...], preferred_element_type=f32) + be_ref[...]
        h_ref[...] = (h0 * math.sqrt(d_model)).reshape(nb, S, dp) + pe_ref[...]
    # TODO(synk): dropout (positional-encoder and encoder-layer dropouts) is
    # identity here (eval / inference mode).

    h = h_ref[...]                                   # (nb, S, dp) float32
    h2d = h.reshape(nb * S, dp).astype(bf16)         # single f32->bf16 cast of h

    # --- single-head self-attention (fused QKV projection) ---
    qkv = jnp.dot(h2d, wqkv_ref[0], preferred_element_type=f32) + bqkv_ref[0]
    qkv = qkv.reshape(nb, S, 3 * dp)
    q = qkv[:, :, 0 * dp:1 * dp].astype(bf16)
    k = qkv[:, :, 1 * dp:2 * dp].astype(bf16)
    v = qkv[:, :, 2 * dp:3 * dp].astype(bf16)

    s = jnp.einsum('bqd,bkd->bqk', q, k, preferred_element_type=f32) * inv_sqrt_d
    s = s - jnp.max(s, axis=-1, keepdims=True)
    p = jnp.exp(s)
    p = p * pl.reciprocal(jnp.sum(p, axis=-1, keepdims=True), approx=True)
    ctx = jnp.einsum('bqk,bkd->bqd', p.astype(bf16), v, preferred_element_type=f32)

    # packed per-layer vectors: rows = [bo, ln1w, ln1b, b2, ln2w, ln2b, 0, 0]
    small = small_ref[0]                             # (8, dp)
    bo, ln1w, ln1b = small[0:1], small[1:2], small[2:3]
    b2, ln2w, ln2b = small[3:4], small[4:5], small[5:6]

    attn = (jnp.dot(ctx.reshape(nb * S, dp).astype(bf16), wo_ref[0],
                    preferred_element_type=f32) + bo).reshape(nb, S, dp)

    # residual + post-LayerNorm (norm_first=False default)
    h1 = layer_norm(h + attn, ln1w, ln1b)

    # --- feed-forward: Linear -> ReLU -> Linear ---
    ff = jnp.dot(h1.reshape(nb * S, dp).astype(bf16), w1_ref[0],
                 preferred_element_type=f32) + b1_ref[0]
    ff = jnp.maximum(ff, 0.0)
    ff = (jnp.dot(ff.astype(bf16), w2_ref[0],
                  preferred_element_type=f32) + b2).reshape(nb, S, dp)
    h2 = layer_norm(h1 + ff, ln2w, ln2b)
    h_ref[...] = h2

    # --- decoder Linear on the last layer step (lane-dense 128-wide store) ---
    @pl.when(layer == n_layers - 1)
    def _():
        out_ref[...] = (jnp.dot(h2.reshape(nb * S, dp).astype(bf16), wd_ref[...],
                                preferred_element_type=f32)
                        + bd_ref[...]).reshape(nb, S, -1)


# ---------------------------------------------------------------------------
# Parameters (synthetic, PyTorch-style init, pre-padded to 128-lane slabs)
# ---------------------------------------------------------------------------
def _round_up(x, m=128):
    return ((x + m - 1) // m) * m


def make_params(key, input_dim, output_dim, num_layers, d_model, d_ff):
    L = num_layers
    d_in_p = _round_up(input_dim)
    dp, dffp, doutp = _round_up(d_model), _round_up(d_ff), _round_up(output_dim)
    initrange = 0.1
    attn_b = math.sqrt(6.0 / (4.0 * d_model))   # xavier for fused in_proj
    proj_b = math.sqrt(1.0 / d_model)           # kaiming(a=sqrt(5)) fan_in=d_model
    ff2_b = math.sqrt(1.0 / d_ff)               # fan_in = d_ff
    bf16 = jnp.bfloat16
    ks = jax.random.split(key, 10)

    def u(k, shape, bound):
        return jax.random.uniform(k, shape, jnp.float32, -bound, bound)

    def pad2(w, r, c):
        return jnp.zeros((r, c), jnp.float32).at[:w.shape[0], :w.shape[1]].set(w)

    def pad3(w, r, c):
        return jnp.zeros((w.shape[0], r, c), jnp.float32).at[:, :w.shape[1], :w.shape[2]].set(w)

    # fused QKV weight slab (L, dp, 3*dp): segments [q | k | v]
    wq = pad3(u(ks[1], (L, d_model, d_model), attn_b), dp, dp)
    wk = pad3(u(ks[2], (L, d_model, d_model), attn_b), dp, dp)
    wv = pad3(u(ks[3], (L, d_model, d_model), attn_b), dp, dp)
    wqkv = jnp.concatenate([wq, wk, wv], axis=-1).astype(bf16)
    bqkv = jnp.zeros((L, 1, 3 * dp), jnp.float32)         # PyTorch: in_proj_bias = 0

    # packed per-layer small vectors: [bo, ln1w, ln1b, b2, ln2w, ln2b, 0, 0]
    small = jnp.zeros((L, 8, dp), jnp.float32)
    small = small.at[:, 1, :d_model].set(1.0)             # ln1 weight
    small = small.at[:, 4, :d_model].set(1.0)             # ln2 weight
    small = small.at[:, 3, :d_model].set(u(ks[4], (L, d_model), ff2_b))   # b2

    w1 = pad3(u(ks[5], (L, d_model, d_ff), proj_b), dp, dffp).astype(bf16)
    b1 = jnp.zeros((L, 1, dffp), jnp.float32).at[:, 0, :d_ff].set(
        u(ks[6], (L, d_ff), proj_b))
    w2 = pad3(u(ks[7], (L, d_ff, d_model), ff2_b), dffp, dp).astype(bf16)
    wo = pad3(u(ks[8], (L, d_model, d_model), proj_b), dp, dp).astype(bf16)

    return dict(
        we=pad2(u(ks[0], (input_dim, d_model), initrange), d_in_p, dp).astype(bf16),
        be=jnp.zeros((1, dp), jnp.float32),
        wqkv=wqkv, bqkv=bqkv, wo=wo,
        w1=w1, b1=b1, w2=w2, small=small,
        wd=pad2(u(ks[9], (d_model, output_dim), initrange), dp, doutp).astype(bf16),
        bd=jnp.zeros((1, doutp), jnp.float32),
    )


# ---------------------------------------------------------------------------
# Wrapper: VMEM-driven batch blocking + grid construction
# ---------------------------------------------------------------------------
def _chip_vmem_bytes():
    """Physical per-core VMEM (v5e/v6e: 128 MiB, v7x: 64 MiB per TC)."""
    try:
        v = int(pltpu.get_tpu_info().vmem_capacity_bytes)
        return max(32 << 20, min(v, 128 << 20))
    except Exception:
        return 64 << 20            # conservative fallback (v7x per-TC)


def _block_vmem_bytes(nb, S, d_in_p, dp, dffp, doutp):
    """Estimated VMEM for one (batch-block, layer) grid step."""
    act_io = nb * S * (d_in_p + doutp) * 4                  # x block + out block (f32)
    layer_w = (4 * dp * dp + 2 * dp * dffp) * 2             # qkv + wo + w1 + w2 (bf16)
    layer_s = (3 * dp + dffp + 8 * dp) * 4                  # bqkv + b1 + packed slab
    resident = ((d_in_p * dp + dp * doutp) * 2              # encoder / decoder W (bf16)
                + (S + 2) * dp * 4 + doutp * 4)              # pe + be + bd (f32)
    h_scratch = nb * S * dp * 4
    interm = nb * S * (5 * dp + dffp + max(S, 128)) * 4     # qkv / ff / scores / live f32
    return 2 * (act_io + layer_w + layer_s) + resident + h_scratch + interm


def _pick_batch_block(N, S, d_in_p, dp, dffp, doutp, budget):
    """Largest divisor of N whose block fits the VMEM budget (prefers nb == N,
    i.e. one batch block -> weight stack streamed from HBM exactly once)."""
    best = 1
    for nb in range(1, N + 1):
        if N % nb == 0 and _block_vmem_bytes(nb, S, d_in_p, dp, dffp, doutp) <= budget:
            best = nb
    return best


def transformer_forward(src, params, *, d_model, output_dim):
    """src: (S, N, input_dim)  ->  (S, N, output_dim), like the PyTorch module."""
    S, N, d_in = src.shape
    L = params["wqkv"].shape[0]
    d_in_p, dp = params["we"].shape
    dffp = params["w1"].shape[2]
    doutp = params["wd"].shape[1]

    # batch-major, lane-padded input (unmasked x DMA, clean encoder-matmul LHS)
    x = jnp.transpose(src, (1, 0, 2))
    x = jnp.pad(x, ((0, 0), (0, 0), (0, d_in_p - d_in)))

    # positional-encoding table (S, dp); padded lanes stay zero
    pos = jnp.arange(S, dtype=jnp.float32)[:, None]
    div = jnp.exp(jnp.arange(0, d_model, 2, dtype=jnp.float32)
                  * (-math.log(10000.0) / d_model))
    pe = jnp.zeros((S, dp), jnp.float32)
    pe = pe.at[:, 0:d_model:2].set(jnp.sin(pos * div))
    pe = pe.at[:, 1:d_model:2].set(jnp.cos(pos * div))

    phys_vmem = _chip_vmem_bytes()
    nb = _pick_batch_block(N, S, d_in_p, dp, dffp, doutp, int(phys_vmem * 0.70))
    grid = (N // nb, L)
    vmem_limit = int(min(
        max(_block_vmem_bytes(nb, S, d_in_p, dp, dffp, doutp) + (4 << 20), 16 << 20),
        int(phys_vmem * 0.90)))

    def per_call(shape):     # whole-array operand, resident across all grid steps
        return pl.BlockSpec(shape, lambda b, l, _n=len(shape): (0,) * _n)

    def per_layer(shape):    # stacked (L, ...) operand streamed along the layer axis
        return pl.BlockSpec(shape, lambda b, l, _n=len(shape): (l,) + (0,) * (_n - 1))

    in_specs = [
        pl.BlockSpec((nb, S, d_in_p), lambda b, l: (b, 0, 0)),   # x
        per_call((S, dp)),                                       # pe
        per_call((d_in_p, dp)), per_call((1, dp)),               # encoder W, b
        per_layer((1, dp, 3 * dp)), per_layer((1, 1, 3 * dp)),   # fused QKV W, b
        per_layer((1, dp, dp)),                                  # attn out-proj W
        per_layer((1, dp, dffp)), per_layer((1, 1, dffp)),       # FFN W1, b1
        per_layer((1, dffp, dp)),                                # FFN W2
        per_layer((1, 8, dp)),                                   # packed bo/ln1/b2/ln2
        per_call((dp, doutp)), per_call((1, doutp)),             # decoder W, b
    ]

    args = (x, pe, params["we"], params["be"],
            params["wqkv"], params["bqkv"], params["wo"],
            params["w1"], params["b1"], params["w2"], params["small"],
            params["wd"], params["bd"])

    out = pl.pallas_call(
        functools.partial(transformer_kernel, d_model=d_model),
        out_shape=jax.ShapeDtypeStruct((N, S, doutp), jnp.float32),
        grid_spec=pltpu.PrefetchScalarGridSpec(
            num_scalar_prefetch=0,
            grid=grid,
            in_specs=in_specs,
            out_specs=pl.BlockSpec((nb, S, doutp), lambda b, l: (b, 0, 0)),
            scratch_shapes=[pltpu.VMEM((nb, S, dp), jnp.float32)]),
        compiler_params=pltpu.CompilerParams(
            dimension_semantics=("parallel", "arbitrary"),
            vmem_limit_bytes=vmem_limit),
    )(*args)

    return jnp.transpose(out[:, :, :output_dim], (1, 0, 2))


# ---------------------------------------------------------------------------
# Demo
# ---------------------------------------------------------------------------
if __name__ == "__main__":
    input_dim, output_dim = 16, 8
    num_layers, d_model, d_ff, dropout = 2, 32, 64, 0.1
    S, N = 8, 2                                            # seq len, batch

    key = jax.random.PRNGKey(0)
    kx, kp = jax.random.split(key)
    src = jax.random.normal(kx, (S, N, input_dim), jnp.float32)
    params = make_params(kp, input_dim, output_dim, num_layers, d_model, d_ff)

    out = transformer_forward(src, params, d_model=d_model, output_dim=output_dim)
    out = jax.block_until_ready(out)
    assert out.shape == (S, N, output_dim)
    assert bool(jnp.all(jnp.isfinite(out)))
    print("KERNEL_OK")
</pallas_src>

<mosaic_0001>
module attributes {stable_mosaic.version = 11 : i64} {
  func.func @transformer_kernel(%arg0: i32, %arg1: i32, %arg2: memref<2x8x128xf32, #tpu.memory_space<vmem>>, %arg3: memref<8x128xf32, #tpu.memory_space<vmem>>, %arg4: memref<128x128xbf16, #tpu.memory_space<vmem>>, %arg5: memref<1x128xf32, #tpu.memory_space<vmem>>, %arg6: memref<1x128x384xbf16, #tpu.memory_space<vmem>>, %arg7: memref<1x1x384xf32, #tpu.memory_space<vmem>>, %arg8: memref<1x128x128xbf16, #tpu.memory_space<vmem>>, %arg9: memref<1x128x128xbf16, #tpu.memory_space<vmem>>, %arg10: memref<1x1x128xf32, #tpu.memory_space<vmem>>, %arg11: memref<1x128x128xbf16, #tpu.memory_space<vmem>>, %arg12: memref<1x8x128xf32, #tpu.memory_space<vmem>>, %arg13: memref<128x128xbf16, #tpu.memory_space<vmem>>, %arg14: memref<1x128xf32, #tpu.memory_space<vmem>>, %arg15: memref<2x8x128xf32, #tpu.memory_space<vmem>>, %arg16: memref<2x8x128xf32, #tpu.memory_space<vmem>>) attributes {dimension_semantics = [#tpu.dimension_semantics<parallel>, #tpu.dimension_semantics<arbitrary>], iteration_bounds = array<i64: 1, 2>, scalar_prefetch = 0 : i64, scratch_operands = 1 : i64, tpu.core_type = #tpu.core_type<tc>, window_params = [{transform_indices = @transform_0, window_bounds = array<i64: 2, 8, 128>}, {pipeline_mode = #tpu.pipeline_mode<synchronous>, transform_indices = @transform_1, window_bounds = array<i64: 8, 128>}, {pipeline_mode = #tpu.pipeline_mode<synchronous>, transform_indices = @transform_2, window_bounds = array<i64: 128, 128>}, {pipeline_mode = #tpu.pipeline_mode<synchronous>, transform_indices = @transform_3, window_bounds = array<i64: 1, 128>}, {transform_indices = @transform_4, window_bounds = array<i64: 1, 128, 384>}, {transform_indices = @transform_5, window_bounds = array<i64: 1, 1, 384>}, {transform_indices = @transform_6, window_bounds = array<i64: 1, 128, 128>}, {transform_indices = @transform_7, window_bounds = array<i64: 1, 128, 128>}, {transform_indices = @transform_8, window_bounds = array<i64: 1, 1, 128>}, {transform_indices = @transform_9, window_bounds = array<i64: 1, 128, 128>}, {transform_indices = @transform_10, window_bounds = array<i64: 1, 8, 128>}, {pipeline_mode = #tpu.pipeline_mode<synchronous>, transform_indices = @transform_11, window_bounds = array<i64: 128, 128>}, {pipeline_mode = #tpu.pipeline_mode<synchronous>, transform_indices = @transform_12, window_bounds = array<i64: 1, 128>}, {transform_indices = @transform_13, window_bounds = array<i64: 2, 8, 128>}]} {
    %c0_i32 = arith.constant 0 : i32
    %0 = arith.cmpi eq, %arg1, %c0_i32 : i32
    %1 = arith.extui %0 : i1 to i32
    %c0_i32_0 = arith.constant 0 : i32
    %2 = arith.cmpi ne, %1, %c0_i32_0 : i32
    scf.if %2 {
      %c0_47 = arith.constant 0 : index
      %c0_48 = arith.constant 0 : index
      %c0_49 = arith.constant 0 : index
      %123 = vector.load %arg2[%c0_47, %c0_48, %c0_49] : memref<2x8x128xf32, #tpu.memory_space<vmem>>, vector<2x8x128xf32>
      %124 = vector.shape_cast %123 : vector<2x8x128xf32> to vector<16x128xf32>
      %125 = arith.truncf %124 : vector<16x128xf32> to vector<16x128xbf16>
      %c0_50 = arith.constant 0 : index
      %c0_51 = arith.constant 0 : index
      %126 = vector.load %arg4[%c0_50, %c0_51] : memref<128x128xbf16, #tpu.memory_space<vmem>>, vector<128x128xbf16>
      %cst_52 = arith.constant dense<0.000000e+00> : vector<16x128xf32>
      %127 = tpu.matmul %125, %126, %cst_52 {dimension_numbers = #tpu.dot_dimension_numbers<[1], [0], [0], [1], [0, 0, 1, 1], [], []>} : vector<16x128xbf16>, vector<128x128xbf16>, vector<16x128xf32> -> vector<16x128xf32>
      %c0_53 = arith.constant 0 : index
      %c0_54 = arith.constant 0 : index
      %128 = vector.load %arg5[%c0_53, %c0_54] : memref<1x128xf32, #tpu.memory_space<vmem>>, vector<1x128xf32>
      %129 = vector.broadcast %128 : vector<1x128xf32> to vector<16x128xf32>
      %130 = arith.addf %127, %129 : vector<16x128xf32>
      %cst_55 = arith.constant 5.65685415 : f32
      %131 = vector.broadcast %cst_55 : f32 to vector<16x128xf32>
      %132 = arith.mulf %130, %131 : vector<16x128xf32>
      %133 = vector.shape_cast %132 : vector<16x128xf32> to vector<2x8x128xf32>
      %c0_56 = arith.constant 0 : index
      %c0_57 = arith.constant 0 : index
      %134 = vector.load %arg3[%c0_56, %c0_57] : memref<8x128xf32, #tpu.memory_space<vmem>>, vector<8x128xf32>
      %135 = vector.shape_cast %134 : vector<8x128xf32> to vector<1x8x128xf32>
      %136 = vector.broadcast %135 : vector<1x8x128xf32> to vector<2x8x128xf32>
      %137 = arith.addf %133, %136 : vector<2x8x128xf32>
      %c0_58 = arith.constant 0 : index
      %c0_59 = arith.constant 0 : index
      %c0_60 = arith.constant 0 : index
      %138 = vector.load %arg16[%c0_58, %c0_59, %c0_60] : memref<2x8x128xf32, #tpu.memory_space<vmem>>, vector<2x8x128xf32>
      tpu.vector_store %arg16[%c0_58, %c0_59, %c0_60], %137 {strides = array<i32>} : memref<2x8x128xf32, #tpu.memory_space<vmem>>, vector<2x8x128xf32>,
    } else {
    }
    %c0 = arith.constant 0 : index
    %c0_1 = arith.constant 0 : index
    %c0_2 = arith.constant 0 : index
    %3 = vector.load %arg16[%c0, %c0_1, %c0_2] : memref<2x8x128xf32, #tpu.memory_space<vmem>>, vector<2x8x128xf32>
    %4 = vector.shape_cast %3 : vector<2x8x128xf32> to vector<16x128xf32>
    %5 = arith.truncf %4 : vector<16x128xf32> to vector<16x128xbf16>
    %c0_3 = arith.constant 0 : index
    %c0_4 = arith.constant 0 : index
    %c0_5 = arith.constant 0 : index
    %6 = vector.load %arg6[%c0_3, %c0_4, %c0_5] : memref<1x128x384xbf16, #tpu.memory_space<vmem>>, vector<1x128x384xbf16>
    %7 = vector.shape_cast %6 : vector<1x128x384xbf16> to vector<128x384xbf16>
    %cst = arith.constant dense<0.000000e+00> : vector<16x384xf32>
    %8 = tpu.matmul %5, %7, %cst {dimension_numbers = #tpu.dot_dimension_numbers<[1], [0], [0], [1], [0, 0, 1, 1], [], []>} : vector<16x128xbf16>, vector<128x384xbf16>, vector<16x384xf32> -> vector<16x384xf32>
    %c0_6 = arith.constant 0 : index
    %c0_7 = arith.constant 0 : index
    %c0_8 = arith.constant 0 : index
    %9 = vector.load %arg7[%c0_6, %c0_7, %c0_8] : memref<1x1x384xf32, #tpu.memory_space<vmem>>, vector<1x1x384xf32>
    %10 = vector.shape_cast %9 : vector<1x1x384xf32> to vector<1x384xf32>
    %11 = vector.broadcast %10 : vector<1x384xf32> to vector<16x384xf32>
    %12 = arith.addf %8, %11 : vector<16x384xf32>
    %13 = vector.shape_cast %12 : vector<16x384xf32> to vector<2x8x384xf32>
    %14 = vector.extract_strided_slice %13 {offsets = [0, 0, 0], sizes = [2, 8, 128], strides = [1, 1, 1]} : vector<2x8x384xf32> to vector<2x8x128xf32>
    %15 = arith.truncf %14 : vector<2x8x128xf32> to vector<2x8x128xbf16>
    %16 = vector.extract_strided_slice %13 {offsets = [0, 0, 128], sizes = [2, 8, 128], strides = [1, 1, 1]} : vector<2x8x384xf32> to vector<2x8x128xf32>
    %17 = arith.truncf %16 : vector<2x8x128xf32> to vector<2x8x128xbf16>
    %18 = vector.extract_strided_slice %13 {offsets = [0, 0, 256], sizes = [2, 8, 128], strides = [1, 1, 1]} : vector<2x8x384xf32> to vector<2x8x128xf32>
    %19 = arith.truncf %18 : vector<2x8x128xf32> to vector<2x8x128xbf16>
    "tpu.trace_start"() <{level = 10 : i32, message = "bqd,bkd->bqk"}> : () -> ()
    %cst_9 = arith.constant dense<0.000000e+00> : vector<2x8x8xf32>
    %20 = tpu.matmul %15, %17, %cst_9 {dimension_numbers = #tpu.dot_dimension_numbers<[2], [2], [1], [1], [0, 0, 0, 1, 1, 1], [0], [0]>} : vector<2x8x128xbf16>, vector<2x8x128xbf16>, vector<2x8x8xf32> -> vector<2x8x8xf32>
    "tpu.trace_stop"() : () -> ()
    %cst_10 = arith.constant 0.176776692 : f32
    %21 = vector.broadcast %cst_10 : f32 to vector<2x8x8xf32>
    %22 = arith.mulf %20, %21 : vector<2x8x8xf32>
    %cst_11 = arith.constant dense<0xFF800000> : vector<2x8xf32>
    %23 = vector.multi_reduction <maximumf>, %22, %cst_11 [2] : vector<2x8x8xf32> to vector<2x8xf32>
    %24 = vector.shape_cast %23 : vector<2x8xf32> to vector<2x8x1xf32>
    %25 = vector.broadcast %24 : vector<2x8x1xf32> to vector<2x8x8xf32>
    %26 = arith.subf %22, %25 : vector<2x8x8xf32>
    %27 = math.exp %26 : vector<2x8x8xf32>
    %cst_12 = arith.constant dense<0.000000e+00> : vector<2x8xf32>
    %28 = vector.multi_reduction <add>, %27, %cst_12 [2] : vector<2x8x8xf32> to vector<2x8xf32>
    %29 = vector.shape_cast %28 : vector<2x8xf32> to vector<2x8x1xf32>
    %30 = tpu.reciprocal %29 {approx = true} : vector<2x8x1xf32> -> vector<2x8x1xf32>
    %31 = vector.broadcast %30 : vector<2x8x1xf32> to vector<2x8x8xf32>
    %32 = arith.mulf %27, %31 : vector<2x8x8xf32>
    %33 = arith.truncf %32 : vector<2x8x8xf32> to vector<2x8x8xbf16>
    "tpu.trace_start"() <{level = 10 : i32, message = "bqk,bkd->bqd"}> : () -> ()
    %cst_13 = arith.constant dense<0.000000e+00> : vector<2x8x128xf32>
    %34 = tpu.matmul %33, %19, %cst_13 {dimension_numbers = #tpu.dot_dimension_numbers<[2], [1], [1], [2], [0, 0, 0, 1, 1, 2], [0], [0]>} : vector<2x8x8xbf16>, vector<2x8x128xbf16>, vector<2x8x128xf32> -> vector<2x8x128xf32>
    "tpu.trace_stop"() : () -> ()
    %c0_14 = arith.constant 0 : index
    %c0_15 = arith.constant 0 : index
    %c0_16 = arith.constant 0 : index
    %35 = vector.load %arg12[%c0_14, %c0_15, %c0_16] : memref<1x8x128xf32, #tpu.memory_space<vmem>>, vector<1x8x128xf32>
    %36 = vector.shape_cast %35 : vector<1x8x128xf32> to vector<8x128xf32>
    %37 = vector.extract_strided_slice %36 {offsets = [0, 0], sizes = [1, 128], strides = [1, 1]} : vector<8x128xf32> to vector<1x128xf32>
    %38 = vector.extract_strided_slice %36 {offsets = [1, 0], sizes = [1, 128], strides = [1, 1]} : vector<8x128xf32> to vector<1x128xf32>
    %39 = vector.extract_strided_slice %36 {offsets = [2, 0], sizes = [1, 128], strides = [1, 1]} : vector<8x128xf32> to vector<1x128xf32>
    %40 = vector.extract_strided_slice %36 {offsets = [3, 0], sizes = [1, 128], strides = [1, 1]} : vector<8x128xf32> to vector<1x128xf32>
    %41 = vector.extract_strided_slice %36 {offsets = [4, 0], sizes = [1, 128], strides = [1, 1]} : vector<8x128xf32> to vector<1x128xf32>
    %42 = vector.extract_strided_slice %36 {offsets = [5, 0], sizes = [1, 128], strides = [1, 1]} : vector<8x128xf32> to vector<1x128xf32>
    %43 = vector.shape_cast %34 : vector<2x8x128xf32> to vector<16x128xf32>
    %44 = arith.truncf %43 : vector<16x128xf32> to vector<16x128xbf16>
    %c0_17 = arith.constant 0 : index
    %c0_18 = arith.constant 0 : index
    %c0_19 = arith.constant 0 : index
    %45 = vector.load %arg8[%c0_17, %c0_18, %c0_19] : memref<1x128x128xbf16, #tpu.memory_space<vmem>>, vector<1x128x128xbf16>
    %46 = vector.shape_cast %45 : vector<1x128x128xbf16> to vector<128x128xbf16>
    %cst_20 = arith.constant dense<0.000000e+00> : vector<16x128xf32>
    %47 = tpu.matmul %44, %46, %cst_20 {dimension_numbers = #tpu.dot_dimension_numbers<[1], [0], [0], [1], [0, 0, 1, 1], [], []>} : vector<16x128xbf16>, vector<128x128xbf16>, vector<16x128xf32> -> vector<16x128xf32>
    %48 = vector.broadcast %37 : vector<1x128xf32> to vector<16x128xf32>
    %49 = arith.addf %47, %48 : vector<16x128xf32>
    %50 = vector.shape_cast %49 : vector<16x128xf32> to vector<2x8x128xf32>
    %51 = arith.addf %3, %50 : vector<2x8x128xf32>
    %cst_21 = arith.constant dense<0.000000e+00> : vector<2x8xf32>
    %52 = vector.multi_reduction <add>, %51, %cst_21 [2] : vector<2x8x128xf32> to vector<2x8xf32>
    %53 = vector.shape_cast %52 : vector<2x8xf32> to vector<2x8x1xf32>
    %cst_22 = arith.constant 3.125000e-02 : f32
    %54 = vector.broadcast %cst_22 : f32 to vector<2x8x1xf32>
    %55 = arith.mulf %53, %54 : vector<2x8x1xf32>
    %56 = arith.mulf %51, %51 : vector<2x8x128xf32>
    %cst_23 = arith.constant dense<0.000000e+00> : vector<2x8xf32>
    %57 = vector.multi_reduction <add>, %56, %cst_23 [2] : vector<2x8x128xf32> to vector<2x8xf32>
    %58 = vector.shape_cast %57 : vector<2x8xf32> to vector<2x8x1xf32>
    %cst_24 = arith.constant 3.125000e-02 : f32
    %59 = vector.broadcast %cst_24 : f32 to vector<2x8x1xf32>
    %60 = arith.mulf %58, %59 : vector<2x8x1xf32>
    %61 = arith.mulf %55, %55 : vector<2x8x1xf32>
    %62 = arith.subf %60, %61 : vector<2x8x1xf32>
    %63 = vector.broadcast %55 : vector<2x8x1xf32> to vector<2x8x128xf32>
    %64 = arith.subf %51, %63 : vector<2x8x128xf32>
    %cst_25 = arith.constant 9.99999974E-6 : f32
    %65 = vector.broadcast %cst_25 : f32 to vector<2x8x1xf32>
    %66 = arith.addf %62, %65 : vector<2x8x1xf32>
    %67 = math.rsqrt %66 : vector<2x8x1xf32>
    %68 = vector.broadcast %67 : vector<2x8x1xf32> to vector<2x8x128xf32>
    %69 = arith.mulf %64, %68 : vector<2x8x128xf32>
    %70 = vector.shape_cast %38 : vector<1x128xf32> to vector<1x1x128xf32>
    %71 = vector.broadcast %70 : vector<1x1x128xf32> to vector<2x8x128xf32>
    %72 = arith.mulf %69, %71 : vector<2x8x128xf32>
    %73 = vector.shape_cast %39 : vector<1x128xf32> to vector<1x1x128xf32>
    %74 = vector.broadcast %73 : vector<1x1x128xf32> to vector<2x8x128xf32>
    %75 = arith.addf %72, %74 : vector<2x8x128xf32>
    %76 = vector.shape_cast %75 : vector<2x8x128xf32> to vector<16x128xf32>
    %77 = arith.truncf %76 : vector<16x128xf32> to vector<16x128xbf16>
    %c0_26 = arith.constant 0 : index
    %c0_27 = arith.constant 0 : index
    %c0_28 = arith.constant 0 : index
    %78 = vector.load %arg9[%c0_26, %c0_27, %c0_28] : memref<1x128x128xbf16, #tpu.memory_space<vmem>>, vector<1x128x128xbf16>
    %79 = vector.shape_cast %78 : vector<1x128x128xbf16> to vector<128x128xbf16>
    %cst_29 = arith.constant dense<0.000000e+00> : vector<16x128xf32>
    %80 = tpu.matmul %77, %79, %cst_29 {dimension_numbers = #tpu.dot_dimension_numbers<[1], [0], [0], [1], [0, 0, 1, 1], [], []>} : vector<16x128xbf16>, vector<128x128xbf16>, vector<16x128xf32> -> vector<16x128xf32>
    %c0_30 = arith.constant 0 : index
    %c0_31 = arith.constant 0 : index
    %c0_32 = arith.constant 0 : index
    %81 = vector.load %arg10[%c0_30, %c0_31, %c0_32] : memref<1x1x128xf32, #tpu.memory_space<vmem>>, vector<1x1x128xf32>
    %82 = vector.shape_cast %81 : vector<1x1x128xf32> to vector<1x128xf32>
    %83 = vector.broadcast %82 : vector<1x128xf32> to vector<16x128xf32>
    %84 = arith.addf %80, %83 : vector<16x128xf32>
    %cst_33 = arith.constant 0.000000e+00 : f32
    %85 = vector.broadcast %cst_33 : f32 to vector<16x128xf32>
    %86 = arith.maximumf %84, %85 : vector<16x128xf32>
    %87 = arith.truncf %86 : vector<16x128xf32> to vector<16x128xbf16>
    %c0_34 = arith.constant 0 : index
    %c0_35 = arith.constant 0 : index
    %c0_36 = arith.constant 0 : index
    %88 = vector.load %arg11[%c0_34, %c0_35, %c0_36] : memref<1x128x128xbf16, #tpu.memory_space<vmem>>, vector<1x128x128xbf16>
    %89 = vector.shape_cast %88 : vector<1x128x128xbf16> to vector<128x128xbf16>
    %cst_37 = arith.constant dense<0.000000e+00> : vector<16x128xf32>
    %90 = tpu.matmul %87, %89, %cst_37 {dimension_numbers = #tpu.dot_dimension_numbers<[1], [0], [0], [1], [0, 0, 1, 1], [], []>} : vector<16x128xbf16>, vector<128x128xbf16>, vector<16x128xf32> -> vector<16x128xf32>
    %91 = vector.broadcast %40 : vector<1x128xf32> to vector<16x128xf32>
    %92 = arith.addf %90, %91 : vector<16x128xf32>
    %93 = vector.shape_cast %92 : vector<16x128xf32> to vector<2x8x128xf32>
    %94 = arith.addf %75, %93 : vector<2x8x128xf32>
    %cst_38 = arith.constant dense<0.000000e+00> : vector<2x8xf32>
    %95 = vector.multi_reduction <add>, %94, %cst_38 [2] : vector<2x8x128xf32> to vector<2x8xf32>
    %96 = vector.shape_cast %95 : vector<2x8xf32> to vector<2x8x1xf32>
    %cst_39 = arith.constant 3.125000e-02 : f32
    %97 = vector.broadcast %cst_39 : f32 to vector<2x8x1xf32>
    %98 = arith.mulf %96, %97 : vector<2x8x1xf32>
    %99 = arith.mulf %94, %94 : vector<2x8x128xf32>
    %cst_40 = arith.constant dense<0.000000e+00> : vector<2x8xf32>
    %100 = vector.multi_reduction <add>, %99, %cst_40 [2] : vector<2x8x128xf32> to vector<2x8xf32>
    %101 = vector.shape_cast %100 : vector<2x8xf32> to vector<2x8x1xf32>
    %cst_41 = arith.constant 3.125000e-02 : f32
    %102 = vector.broadcast %cst_41 : f32 to vector<2x8x1xf32>
    %103 = arith.mulf %101, %102 : vector<2x8x1xf32>
    %104 = arith.mulf %98, %98 : vector<2x8x1xf32>
    %105 = arith.subf %103, %104 : vector<2x8x1xf32>
    %106 = vector.broadcast %98 : vector<2x8x1xf32> to vector<2x8x128xf32>
    %107 = arith.subf %94, %106 : vector<2x8x128xf32>
    %cst_42 = arith.constant 9.99999974E-6 : f32
    %108 = vector.broadcast %cst_42 : f32 to vector<2x8x1xf32>
    %109 = arith.addf %105, %108 : vector<2x8x1xf32>
    %110 = math.rsqrt %109 : vector<2x8x1xf32>
    %111 = vector.broadcast %110 : vector<2x8x1xf32> to vector<2x8x128xf32>
    %112 = arith.mulf %107, %111 : vector<2x8x128xf32>
    %113 = vector.shape_cast %41 : vector<1x128xf32> to vector<1x1x128xf32>
    %114 = vector.broadcast %113 : vector<1x1x128xf32> to vector<2x8x128xf32>
    %115 = arith.mulf %112, %114 : vector<2x8x128xf32>
    %116 = vector.shape_cast %42 : vector<1x128xf32> to vector<1x1x128xf32>
    %117 = vector.broadcast %116 : vector<1x1x128xf32> to vector<2x8x128xf32>
    %118 = arith.addf %115, %117 : vector<2x8x128xf32>
    %c0_43 = arith.constant 0 : index
    %c0_44 = arith.constant 0 : index
    %c0_45 = arith.constant 0 : index
    %119 = vector.load %arg16[%c0_43, %c0_44, %c0_45] : memref<2x8x128xf32, #tpu.memory_space<vmem>>, vector<2x8x128xf32>
    tpu.vector_store %arg16[%c0_43, %c0_44, %c0_45], %118 {strides = array<i32>} : memref<2x8x128xf32, #tpu.memory_space<vmem>>, vector<2x8x128xf32>,
    %c1_i32 = arith.constant 1 : i32
    %120 = arith.cmpi eq, %arg1, %c1_i32 : i32
    %121 = arith.extui %120 : i1 to i32
    %c0_i32_46 = arith.constant 0 : i32
    %122 = arith.cmpi ne, %121, %c0_i32_46 : i32
    scf.if %122 {
      %123 = vector.shape_cast %118 : vector<2x8x128xf32> to vector<16x128xf32>
      %124 = arith.truncf %123 : vector<16x128xf32> to vector<16x128xbf16>
      %c0_47 = arith.constant 0 : index
      %c0_48 = arith.constant 0 : index
      %125 = vector.load %arg13[%c0_47, %c0_48] : memref<128x128xbf16, #tpu.memory_space<vmem>>, vector<128x128xbf16>
      %cst_49 = arith.constant dense<0.000000e+00> : vector<16x128xf32>
      %126 = tpu.matmul %124, %125, %cst_49 {dimension_numbers = #tpu.dot_dimension_numbers<[1], [0], [0], [1], [0, 0, 1, 1], [], []>} : vector<16x128xbf16>, vector<128x128xbf16>, vector<16x128xf32> -> vector<16x128xf32>
      %c0_50 = arith.constant 0 : index
      %c0_51 = arith.constant 0 : index
      %127 = vector.load %arg14[%c0_50, %c0_51] : memref<1x128xf32, #tpu.memory_space<vmem>>, vector<1x128xf32>
      %128 = vector.broadcast %127 : vector<1x128xf32> to vector<16x128xf32>
      %129 = arith.addf %126, %128 : vector<16x128xf32>
      %130 = vector.shape_cast %129 : vector<16x128xf32> to vector<2x8x128xf32>
      %c0_52 = arith.constant 0 : index
      %c0_53 = arith.constant 0 : index
      %c0_54 = arith.constant 0 : index
      %131 = vector.load %arg15[%c0_52, %c0_53, %c0_54] : memref<2x8x128xf32, #tpu.memory_space<vmem>>, vector<2x8x128xf32>
      tpu.vector_store %arg15[%c0_52, %c0_53, %c0_54], %130 {strides = array<i32>} : memref<2x8x128xf32, #tpu.memory_space<vmem>>, vector<2x8x128xf32>,
    } else {
    }
    return
  }
  func.func @transform_0(%arg0: i32, %arg1: i32) -> (i32, i32, i32) {
    %c0_i32 = arith.constant 0 : i32
    %c0_i32_0 = arith.constant 0 : i32
    %c0_i32_1 = arith.constant 0 : i32
    return %arg0, %c0_i32, %c0_i32_0 : i32, i32, i32
  }
  func.func @transform_1(%arg0: i32, %arg1: i32) -> (i32, i32) {
    %c0_i32 = arith.constant 0 : i32
    %c0_i32_0 = arith.constant 0 : i32
    %c0_i32_1 = arith.constant 0 : i32
    return %c0_i32, %c0_i32_0 : i32, i32
  }
  func.func @transform_2(%arg0: i32, %arg1: i32) -> (i32, i32) {
    %c0_i32 = arith.constant 0 : i32
    %c0_i32_0 = arith.constant 0 : i32
    %c0_i32_1 = arith.constant 0 : i32
    return %c0_i32, %c0_i32_0 : i32, i32
  }
  func.func @transform_3(%arg0: i32, %arg1: i32) -> (i32, i32) {
    %c0_i32 = arith.constant 0 : i32
    %c0_i32_0 = arith.constant 0 : i32
    %c0_i32_1 = arith.constant 0 : i32
    return %c0_i32, %c0_i32_0 : i32, i32
  }
  func.func @transform_4(%arg0: i32, %arg1: i32) -> (i32, i32, i32) {
    %c0_i32 = arith.constant 0 : i32
    %c0_i32_0 = arith.constant 0 : i32
    %c0_i32_1 = arith.constant 0 : i32
    return %arg1, %c0_i32, %c0_i32_0 : i32, i32, i32
  }
  func.func @transform_5(%arg0: i32, %arg1: i32) -> (i32, i32, i32) {
    %c0_i32 = arith.constant 0 : i32
    %c0_i32_0 = arith.constant 0 : i32
    %c0_i32_1 = arith.constant 0 : i32
    return %arg1, %c0_i32, %c0_i32_0 : i32, i32, i32
  }
  func.func @transform_6(%arg0: i32, %arg1: i32) -> (i32, i32, i32) {
    %c0_i32 = arith.constant 0 : i32
    %c0_i32_0 = arith.constant 0 : i32
    %c0_i32_1 = arith.constant 0 : i32
    return %arg1, %c0_i32, %c0_i32_0 : i32, i32, i32
  }
  func.func @transform_7(%arg0: i32, %arg1: i32) -> (i32, i32, i32) {
    %c0_i32 = arith.constant 0 : i32
    %c0_i32_0 = arith.constant 0 : i32
    %c0_i32_1 = arith.constant 0 : i32
    return %arg1, %c0_i32, %c0_i32_0 : i32, i32, i32
  }
  func.func @transform_8(%arg0: i32, %arg1: i32) -> (i32, i32, i32) {
    %c0_i32 = arith.constant 0 : i32
    %c0_i32_0 = arith.constant 0 : i32
    %c0_i32_1 = arith.constant 0 : i32
    return %arg1, %c0_i32, %c0_i32_0 : i32, i32, i32
  }
  func.func @transform_9(%arg0: i32, %arg1: i32) -> (i32, i32, i32) {
    %c0_i32 = arith.constant 0 : i32
    %c0_i32_0 = arith.constant 0 : i32
    %c0_i32_1 = arith.constant 0 : i32
    return %arg1, %c0_i32, %c0_i32_0 : i32, i32, i32
  }
  func.func @transform_10(%arg0: i32, %arg1: i32) -> (i32, i32, i32) {
    %c0_i32 = arith.constant 0 : i32
    %c0_i32_0 = arith.constant 0 : i32
    %c0_i32_1 = arith.constant 0 : i32
    return %arg1, %c0_i32, %c0_i32_0 : i32, i32, i32
  }
  func.func @transform_11(%arg0: i32, %arg1: i32) -> (i32, i32) {
    %c0_i32 = arith.constant 0 : i32
    %c0_i32_0 = arith.constant 0 : i32
    %c0_i32_1 = arith.constant 0 : i32
    return %c0_i32, %c0_i32_0 : i32, i32
  }
  func.func @transform_12(%arg0: i32, %arg1: i32) -> (i32, i32) {
    %c0_i32 = arith.constant 0 : i32
    %c0_i32_0 = arith.constant 0 : i32
    %c0_i32_1 = arith.constant 0 : i32
    return %c0_i32, %c0_i32_0 : i32, i32
  }
  func.func @transform_13(%arg0: i32, %arg1: i32) -> (i32, i32, i32) {
    %c0_i32 = arith.constant 0 : i32
    %c0_i32_0 = arith.constant 0 : i32
    %c0_i32_1 = arith.constant 0 : i32
    return %arg0, %c0_i32, %c0_i32_0 : i32, i32, i32
  }
}

</mosaic_0001>

<llo_original>
// kernel: tpu_custom_call.1
$region0: #{tpu_custom_call.1}
  #allocation0 [shape = 'u32[]', space=smem, size = 0x4, offset = 0x4, fixed_abs, tag = 'smem constant byte address 0x4 - core index']
  #allocation1 [shape = 'u32[144,128]{1,0:T(1,128)}', space=vmem, size = 0x12000, scoped, tag = 'internal scratch']
  #allocation2 [shape = 'f32[2,8,128]{2,1,0:T(8,128)}', space=vmem, size = 0x2000, scoped, tag = 'scratch operand']
  %s0 = inlined_call_operand.hbm [shape: f32[2,8,128], index: 0, kind: input, shape index: {}]
  %s1 = inlined_call_operand.hbm [shape: f32[8,128], index: 1, kind: input, shape index: {}]
  %s2 = inlined_call_operand.hbm [shape: bf16[128,128], index: 2, kind: input, shape index: {}]
  %s3 = inlined_call_operand.vmem [shape: f32[1,128], index: 3, kind: input, shape index: {}]
  %s4 = inlined_call_operand.hbm [shape: bf16[2,128,384], index: 4, kind: input, shape index: {}]
  %s5 = inlined_call_operand.vmem [shape: f32[2,1,384], index: 5, kind: input, shape index: {}]
  %s6 = inlined_call_operand.hbm [shape: bf16[2,128,128], index: 6, kind: input, shape index: {}]
  %s7 = inlined_call_operand.hbm [shape: bf16[2,128,128], index: 7, kind: input, shape index: {}]
  %s8 = inlined_call_operand.vmem [shape: f32[2,1,128], index: 8, kind: input, shape index: {}]
  %s9 = inlined_call_operand.hbm [shape: bf16[2,128,128], index: 9, kind: input, shape index: {}]
  %s10 = inlined_call_operand.vmem [shape: f32[2,8,128], index: 10, kind: input, shape index: {}]
  %s11 = inlined_call_operand.hbm [shape: bf16[128,128], index: 11, kind: input, shape index: {}]
  %s12 = inlined_call_operand.vmem [shape: f32[1,128], index: 12, kind: input, shape index: {}]
  %s13 = inlined_call_operand.hbm [shape: f32[2,8,128], index: 13, kind: output, shape index: {}]
  %s14 = sld [smem:[#allocation0]]
  $region125: #{tpu_custom_call.1} parent=0
    _
  %s16 = ssub.s32 1, %s14
  %s17 = scalar_select 0, %s16, %s14
  $region1: #{tpu_custom_call.1} parent=0
    #allocation3 [shape = 'u8[8192]{0}', space=vmem, size = 0x2000, scoped, tag = 'input window, operand 0, single buffered']
    #allocation4 [shape = 's32[2]{0}', space=sflag, size = 0x8, scoped, tag = 'scoped memory for tpu_custom_call.1']
    #allocation5 [shape = 's32[2]{0}', space=sflag, size = 0x8, scoped, tag = 'scoped memory for tpu_custom_call.1']
    #allocation6 [shape = 'u8[4096]{0}', space=vmem, size = 0x1000, scoped, tag = 'input window, operand 1, single buffered']
    #allocation7 [shape = 's32[1]{0}', space=sflag, size = 0x4, scoped, tag = 'scoped memory for tpu_custom_call.1']
    #allocation8 [shape = 'u8[32768]{0}', space=vmem, size = 0x8000, scoped, tag = 'input window, operand 2, single buffered']
    #allocation9 [shape = 'u8[196608]{0}', space=vmem, size = 0x30000, scoped, tag = 'input window, operand 4']
    #allocation10 [shape = 's32[2]{0}', space=sflag, size = 0x8, scoped, tag = 'scoped memory for tpu_custom_call.1']
    #allocation11 [shape = 'u8[65536]{0}', space=vmem, size = 0x10000, scoped, tag = 'input window, operand 6']
    #allocation12 [shape = 'u8[65536]{0}', space=vmem, size = 0x10000, scoped, tag = 'input window, operand 7']
    #allocation13 [shape = 's32[2]{0}', space=sflag, size = 0x8, scoped, tag = 'scoped memory for tpu_custom_call.1']
    #allocation14 [shape = 'u8[65536]{0}', space=vmem, size = 0x10000, scoped, tag = 'input window, operand 9']
    #allocation15 [shape = 'u8[32768]{0}', space=vmem, size = 0x8000, scoped, tag = 'input window, operand 11, single buffered']
    #allocation16 [shape = 's32[1]{0}', space=sflag, size = 0x4, scoped, tag = 'scoped memory for tpu_custom_call.1']
    #allocation17 [shape = 'u8[8192]{0}', space=vmem, size = 0x2000, scoped, tag = 'output window, operand 0, single buffered']
    %18 = vsyncpa [#allocation4], 0
    %19 = vsyncpa [#allocation7], 0
    %20 = vsyncpa [#allocation10], 0
    %s21 = scalar_lea.sflag [#allocation10], 1
    %22 = vsyncpa %s21, 0
    %23 = vsyncpa [#allocation13], 0
    %s24 = scalar_lea.sflag [#allocation13], 1
    %25 = vsyncpa %s24, 0
    %26 = vsyncpa [#allocation16], 0
    %27 = vsyncpa [#allocation5], 0
    loop: start=0, step=1, limit=4
    $region2: #{tpu_custom_call.1} parent=1 // loop_pre_header
      _
    $region3: #{tpu_custom_call.1} parent=1 // loop_header
      %s29 = sphi 0, %s33
      %p30 = scmp.ge.s32.totalorder %s29, 4
      %s36 = sphi 0, %s48
      %s37 = sphi 0, %s44
      %s38 = sphi 0, %s36
      %s39 = sphi 0, %s37
      %s40 = sphi 0, %s38
      %s41 = sphi 0, %s39
      %s51 = sphi 0, %s53
      %s54 = sphi 0, %s51
      %s55 = sphi 0, %s54
      %s71 = sphi 0, %s55
      %s75 = sphi 0, %s75
      %s77 = sphi 0, %s75
      %s78 = sphi 0, %s77
      %s92 = sphi 0, %s78
      %s96 = sphi 0, %s96
      %s98 = sphi 0, %s96
      %s99 = sphi 0, %s98
      %s113 = sphi 0, %s99
      %s117 = sphi 0, %s117
      %s119 = sphi 0, %s117
      %s120 = sphi 0, %s119
      %s134 = sphi 0, %s120
      %s140 = sphi 0, %s142
      %s143 = sphi 0, %s140
      %s144 = sphi 0, %s143
      %s160 = sphi 0, %s144
      %s166 = sphi 0, %s168
      %s169 = sphi 0, %s166
      %s170 = sphi 0, %s169
      %s186 = sphi 0, %s170
      %s192 = sphi 0, %s194
      %s195 = sphi 0, %s192
      %s196 = sphi 0, %s195
      %s212 = sphi 0, %s196
      %s218 = sphi 0, %s220
      %s221 = sphi 0, %s218
      %s222 = sphi 0, %s221
      %s238 = sphi 0, %s222
      %s244 = sphi 0, %s246
      %s247 = sphi 0, %s244
      %s248 = sphi 0, %s247
      %s264 = sphi 0, %s248
      %s270 = sphi 0, %s272
      %s273 = sphi 0, %s270
      %s274 = sphi 0, %s273
      %s290 = sphi 0, %s274
      %s296 = sphi 0, %s298
      %s299 = sphi 0, %s296
      %s300 = sphi 0, %s299
      %s316 = sphi 0, %s300
      %s320 = sphi 0, %s320
      %s322 = sphi 0, %s320
      %s323 = sphi 0, %s322
      %s337 = sphi 0, %s323
      %s341 = sphi 0, %s341
      %s343 = sphi 0, %s341
      %s344 = sphi 0, %s343
      %s358 = sphi 0, %s344
      %s364 = sphi 0, %s366
      %s367 = sphi 0, %s364
      %s368 = sphi 0, %s367
      %s384 = sphi 0, %s368
    $region4: #{tpu_custom_call.1} parent=1 // loop_header_branch
      %32 = sbr.rel (%p30) target = $region8
    $region5: #{tpu_custom_call.1} parent=1 // loop_body
      %s34 = ssub.s32 %s29, 1
      %s35 = ssub.s32 %s29, 2
      %s42 = sadd.s32 1, %s37
      %p43 = scmp.ge.s32.totalorder %s42, 2
      %s44 = scalar_select %p43, 0, %s42
      %s45 = sadd.s32 1, %s36
      %s46 = scalar_select %p43, %s45, %s36
      %p47 = scmp.ge.s32.totalorder %s46, 1
      %s48 = scalar_select %p47, 0, %s46
      %s49 = ssub.s32 %s36, %s48
      %p50 = scmp.eq.s32.totalorder %s49, 0
      %s52 = sadd.s32 %s51, 1
      %s53 = scalar_select %p50, %s51, %s52
      %p56 = pneg %p50
      %p57 = scmp.eq.s32.totalorder %s29, 1
      %p58 = por %p56, %p57
      %p59 = scmp.ne.s32.totalorder %s51, %s54
      %p60 = scmp.eq.s32.totalorder %s29, 0
      %p61 = por %p59, %p60
      %p62 = scmp.ne.s32.totalorder %s51, %s54
      %p63 = scmp.eq.s32.totalorder %s34, 1
      %p64 = por %p62, %p63
      %p65 = scmp.ne.s32.totalorder %s54, %s55
      %p66 = scmp.eq.s32.totalorder %s34, 0
      %p67 = por %p65, %p66
      %p68 = scmp.ne.s32.totalorder %s54, %s55
      %p69 = scmp.eq.s32.totalorder %s35, 1
      %p70 = por %p68, %p69
      %p72 = scmp.ne.s32.totalorder %s55, %s71
      %p73 = scmp.eq.s32.totalorder %s35, 0
      %p74 = por %p72, %p73
      %s76 = sadd.s32 %s75, 1
      %p79 = scmp.eq.s32.totalorder %s29, 1
      %p80 = scmp.ne.s32.totalorder %s75, %s77
      %p81 = scmp.eq.s32.totalorder %s29, 0
      %p82 = por %p80, %p81
      %p83 = scmp.ne.s32.totalorder %s75, %s77
      %p84 = scmp.eq.s32.totalorder %s34, 1
      %p85 = por %p83, %p84
      %p86 = scmp.ne.s32.totalorder %s77, %s78
      %p87 = scmp.eq.s32.totalorder %s34, 0
      %p88 = por %p86, %p87
      %p89 = scmp.ne.s32.totalorder %s77, %s78
      %p90 = scmp.eq.s32.totalorder %s35, 1
      %p91 = por %p89, %p90
      %p93 = scmp.ne.s32.totalorder %s78, %s92
      %p94 = scmp.eq.s32.totalorder %s35, 0
      %p95 = por %p93, %p94
      %s97 = sadd.s32 %s96, 1
      %p100 = scmp.eq.s32.totalorder %s29, 1
      %p101 = scmp.ne.s32.totalorder %s96, %s98
      %p102 = scmp.eq.s32.totalorder %s29, 0
      %p103 = por %p101, %p102
      %p104 = scmp.ne.s32.totalorder %s96, %s98
      %p105 = scmp.eq.s32.totalorder %s34, 1
      %p106 = por %p104, %p105
      %p107 = scmp.ne.s32.totalorder %s98, %s99
      %p108 = scmp.eq.s32.totalorder %s34, 0
      %p109 = por %p107, %p108
      %p110 = scmp.ne.s32.totalorder %s98, %s99
      %p111 = scmp.eq.s32.totalorder %s35, 1
      %p112 = por %p110, %p111
      %p114 = scmp.ne.s32.totalorder %s99, %s113
      %p115 = scmp.eq.s32.totalorder %s35, 0
      %p116 = por %p114, %p115
      %s118 = sadd.s32 %s117, 1
      %p121 = scmp.eq.s32.totalorder %s29, 1
      %p122 = scmp.ne.s32.totalorder %s117, %s119
      %p123 = scmp.eq.s32.totalorder %s29, 0
      %p124 = por %p122, %p123
      %p125 = scmp.ne.s32.totalorder %s117, %s119
      %p126 = scmp.eq.s32.totalorder %s34, 1
      %p127 = por %p125, %p126
      %p128 = scmp.ne.s32.totalorder %s119, %s120
      %p129 = scmp.eq.s32.totalorder %s34, 0
      %p130 = por %p128, %p129
      %p131 = scmp.ne.s32.totalorder %s119, %s120
      %p132 = scmp.eq.s32.totalorder %s35, 1
      %p133 = por %p131, %p132
      %p135 = scmp.ne.s32.totalorder %s120, %s134
      %p136 = scmp.eq.s32.totalorder %s35, 0
      %p137 = por %p135, %p136
      %s138 = ssub.s32 %s37, %s44
      %p139 = scmp.eq.s32.totalorder %s138, 0
      %s141 = sadd.s32 %s140, 1
      %s142 = scalar_select %p139, %s140, %s141
      %p145 = pneg %p139
      %p146 = scmp.eq.s32.totalorder %s29, 1
      %p147 = por %p145, %p146
      %p148 = scmp.ne.s32.totalorder %s140, %s143
      %p149 = scmp.eq.s32.totalorder %s29, 0
      %p150 = por %p148, %p149
      %p151 = scmp.ne.s32.totalorder %s140, %s143
      %p152 = scmp.eq.s32.totalorder %s34, 1
      %p153 = por %p151, %p152
      %p154 = scmp.ne.s32.totalorder %s143, %s144
      %p155 = scmp.eq.s32.totalorder %s34, 0
      %p156 = por %p154, %p155
      %p157 = scmp.ne.s32.totalorder %s143, %s144
      %p158 = scmp.eq.s32.totalorder %s35, 1
      %p159 = por %p157, %p158
      %p161 = scmp.ne.s32.totalorder %s144, %s160
      %p162 = scmp.eq.s32.totalorder %s35, 0
      %p163 = por %p161, %p162
      %s164 = ssub.s32 %s37, %s44
      %p165 = scmp.eq.s32.totalorder %s164, 0
      %s167 = sadd.s32 %s166, 1
      %s168 = scalar_select %p165, %s166, %s167
      %p171 = pneg %p165
      %p172 = scmp.eq.s32.totalorder %s29, 1
      %p173 = por %p171, %p172
      %p174 = scmp.ne.s32.totalorder %s166, %s169
      %p175 = scmp.eq.s32.totalorder %s29, 0
      %p176 = por %p174, %p175
      %p177 = scmp.ne.s32.totalorder %s166, %s169
      %p178 = scmp.eq.s32.totalorder %s34, 1
      %p179 = por %p177, %p178
      %p180 = scmp.ne.s32.totalorder %s169, %s170
      %p181 = scmp.eq.s32.totalorder %s34, 0
      %p182 = por %p180, %p181
      %p183 = scmp.ne.s32.totalorder %s169, %s170
      %p184 = scmp.eq.s32.totalorder %s35, 1
      %p185 = por %p183, %p184
      %p187 = scmp.ne.s32.totalorder %s170, %s186
      %p188 = scmp.eq.s32.totalorder %s35, 0
      %p189 = por %p187, %p188
      %s190 = ssub.s32 %s37, %s44
      %p191 = scmp.eq.s32.totalorder %s190, 0
      %s193 = sadd.s32 %s192, 1
      %s194 = scalar_select %p191, %s192, %s193
      %p197 = pneg %p191
      %p198 = scmp.eq.s32.totalorder %s29, 1
      %p199 = por %p197, %p198
      %p200 = scmp.ne.s32.totalorder %s192, %s195
      %p201 = scmp.eq.s32.totalorder %s29, 0
      %p202 = por %p200, %p201
      %p203 = scmp.ne.s32.totalorder %s192, %s195
      %p204 = scmp.eq.s32.totalorder %s34, 1
      %p205 = por %p203, %p204
      %p206 = scmp.ne.s32.totalorder %s195, %s196
      %p207 = scmp.eq.s32.totalorder %s34, 0
      %p208 = por %p206, %p207
      %p209 = scmp.ne.s32.totalorder %s195, %s196
      %p210 = scmp.eq.s32.totalorder %s35, 1
      %p211 = por %p209, %p210
      %p213 = scmp.ne.s32.totalorder %s196, %s212
      %p214 = scmp.eq.s32.totalorder %s35, 0
      %p215 = por %p213, %p214
      %s216 = ssub.s32 %s37, %s44
      %p217 = scmp.eq.s32.totalorder %s216, 0
      %s219 = sadd.s32 %s218, 1
      %s220 = scalar_select %p217, %s218, %s219
      %p223 = pneg %p217
      %p224 = scmp.eq.s32.totalorder %s29, 1
      %p225 = por %p223, %p224
      %p226 = scmp.ne.s32.totalorder %s218, %s221
      %p227 = scmp.eq.s32.totalorder %s29, 0
      %p228 = por %p226, %p227
      %p229 = scmp.ne.s32.totalorder %s218, %s221
      %p230 = scmp.eq.s32.totalorder %s34, 1
      %p231 = por %p229, %p230
      %p232 = scmp.ne.s32.totalorder %s221, %s222
      %p233 = scmp.eq.s32.totalorder %s34, 0
      %p234 = por %p232, %p233
      %p235 = scmp.ne.s32.totalorder %s221, %s222
      %p236 = scmp.eq.s32.totalorder %s35, 1
      %p237 = por %p235, %p236
      %p239 = scmp.ne.s32.totalorder %s222, %s238
      %p240 = scmp.eq.s32.totalorder %s35, 0
      %p241 = por %p239, %p240
      %s242 = ssub.s32 %s37, %s44
      %p243 = scmp.eq.s32.totalorder %s242, 0
      %s245 = sadd.s32 %s244, 1
      %s246 = scalar_select %p243, %s244, %s245
      %p249 = pneg %p243
      %p250 = scmp.eq.s32.totalorder %s29, 1
      %p251 = por %p249, %p250
      %p252 = scmp.ne.s32.totalorder %s244, %s247
      %p253 = scmp.eq.s32.totalorder %s29, 0
      %p254 = por %p252, %p253
      %p255 = scmp.ne.s32.totalorder %s244, %s247
      %p256 = scmp.eq.s32.totalorder %s34, 1
      %p257 = por %p255, %p256
      %p258 = scmp.ne.s32.totalorder %s247, %s248
      %p259 = scmp.eq.s32.totalorder %s34, 0
      %p260 = por %p258, %p259
      %p261 = scmp.ne.s32.totalorder %s247, %s248
      %p262 = scmp.eq.s32.totalorder %s35, 1
      %p263 = por %p261, %p262
      %p265 = scmp.ne.s32.totalorder %s248, %s264
      %p266 = scmp.eq.s32.totalorder %s35, 0
      %p267 = por %p265, %p266
      %s268 = ssub.s32 %s37, %s44
      %p269 = scmp.eq.s32.totalorder %s268, 0
      %s271 = sadd.s32 %s270, 1
      %s272 = scalar_select %p269, %s270, %s271
      %p275 = pneg %p269
      %p276 = scmp.eq.s32.totalorder %s29, 1
      %p277 = por %p275, %p276
      %p278 = scmp.ne.s32.totalorder %s270, %s273
      %p279 = scmp.eq.s32.totalorder %s29, 0
      %p280 = por %p278, %p279
      %p281 = scmp.ne.s32.totalorder %s270, %s273
      %p282 = scmp.eq.s32.totalorder %s34, 1
      %p283 = por %p281, %p282
      %p284 = scmp.ne.s32.totalorder %s273, %s274
      %p285 = scmp.eq.s32.totalorder %s34, 0
      %p286 = por %p284, %p285
      %p287 = scmp.ne.s32.totalorder %s273, %s274
      %p288 = scmp.eq.s32.totalorder %s35, 1
      %p289 = por %p287, %p288
      %p291 = scmp.ne.s32.totalorder %s274, %s290
      %p292 = scmp.eq.s32.totalorder %s35, 0
      %p293 = por %p291, %p292
      %s294 = ssub.s32 %s37, %s44
      %p295 = scmp.eq.s32.totalorder %s294, 0
      %s297 = sadd.s32 %s296, 1
      %s298 = scalar_select %p295, %s296, %s297
      %p301 = pneg %p295
      %p302 = scmp.eq.s32.totalorder %s29, 1
      %p303 = por %p301, %p302
      %p304 = scmp.ne.s32.totalorder %s296, %s299
      %p305 = scmp.eq.s32.totalorder %s29, 0
      %p306 = por %p304, %p305
      %p307 = scmp.ne.s32.totalorder %s296, %s299
      %p308 = scmp.eq.s32.totalorder %s34, 1
      %p309 = por %p307, %p308
      %p310 = scmp.ne.s32.totalorder %s299, %s300
      %p311 = scmp.eq.s32.totalorder %s34, 0
      %p312 = por %p310, %p311
      %p313 = scmp.ne.s32.totalorder %s299, %s300
      %p314 = scmp.eq.s32.totalorder %s35, 1
      %p315 = por %p313, %p314
      %p317 = scmp.ne.s32.totalorder %s300, %s316
      %p318 = scmp.eq.s32.totalorder %s35, 0
      %p319 = por %p317, %p318
      %s321 = sadd.s32 %s320, 1
      %p324 = scmp.eq.s32.totalorder %s29, 1
      %p325 = scmp.ne.s32.totalorder %s320, %s322
      %p326 = scmp.eq.s32.totalorder %s29, 0
      %p327 = por %p325, %p326
      %p328 = scmp.ne.s32.totalorder %s320, %s322
      %p329 = scmp.eq.s32.totalorder %s34, 1
      %p330 = por %p328, %p329
      %p331 = scmp.ne.s32.totalorder %s322, %s323
      %p332 = scmp.eq.s32.totalorder %s34, 0
      %p333 = por %p331, %p332
      %p334 = scmp.ne.s32.totalorder %s322, %s323
      %p335 = scmp.eq.s32.totalorder %s35, 1
      %p336 = por %p334, %p335
      %p338 = scmp.ne.s32.totalorder %s323, %s337
      %p339 = scmp.eq.s32.totalorder %s35, 0
      %p340 = por %p338, %p339
      %s342 = sadd.s32 %s341, 1
      %p345 = scmp.eq.s32.totalorder %s29, 1
      %p346 = scmp.ne.s32.totalorder %s341, %s343
      %p347 = scmp.eq.s32.totalorder %s29, 0
      %p348 = por %p346, %p347
      %p349 = scmp.ne.s32.totalorder %s341, %s343
      %p350 = scmp.eq.s32.totalorder %s34, 1
      %p351 = por %p349, %p350
      %p352 = scmp.ne.s32.totalorder %s343, %s344
      %p353 = scmp.eq.s32.totalorder %s34, 0
      %p354 = por %p352, %p353
      %p355 = scmp.ne.s32.totalorder %s343, %s344
      %p356 = scmp.eq.s32.totalorder %s35, 1
      %p357 = por %p355, %p356
      %p359 = scmp.ne.s32.totalorder %s344, %s358
      %p360 = scmp.eq.s32.totalorder %s35, 0
      %p361 = por %p359, %p360
      %s362 = ssub.s32 %s36, %s48
      %p363 = scmp.eq.s32.totalorder %s362, 0
      %s365 = sadd.s32 %s364, 1
      %s366 = scalar_select %p363, %s364, %s365
      %p369 = pneg %p363
      %p370 = scmp.eq.s32.totalorder %s29, 1
      %p371 = por %p369, %p370
      %p372 = scmp.ne.s32.totalorder %s364, %s367
      %p373 = scmp.eq.s32.totalorder %s29, 0
      %p374 = por %p372, %p373
      %p375 = scmp.ne.s32.totalorder %s364, %s367
      %p376 = scmp.eq.s32.totalorder %s34, 1
      %p377 = por %p375, %p376
      %p378 = scmp.ne.s32.totalorder %s367, %s368
      %p379 = scmp.eq.s32.totalorder %s34, 0
      %p380 = por %p378, %p379
      %p381 = scmp.ne.s32.totalorder %s367, %s368
      %p382 = scmp.eq.s32.totalorder %s35, 1
      %p383 = por %p381, %p382
      %p385 = scmp.ne.s32.totalorder %s368, %s384
      %p386 = scmp.eq.s32.totalorder %s35, 0
      %p387 = por %p385, %p386
      %p388 = scmp.le.s32.totalorder 1, %s29
      %p389 = scmp.lt.s32.totalorder %s29, 3
      %p390 = pnand %p388, %p389
      %p391 = pneg %p390
      // Predicated region
      $region9: #{tpu_custom_call.1} parent=5 // pred_check
        _
      $region10: #{tpu_custom_call.1} parent=5 // pred_check_branch
        %393 = sbr.rel (%p390) target = $region12
      $region11: #{tpu_custom_call.1} parent=5 // pred_region
        %s394 = ssub.s32 %s29, 1
        // Predicated region
        $region13: #{tpu_custom_call.1} parent=11 // pred_check
          %p395 = pneg %p67
        $region14: #{tpu_custom_call.1} parent=11 // pred_check_branch
          %397 = sbr.rel (%p395) target = $region16
        $region15: #{tpu_custom_call.1} parent=11 // pred_region
          %s398 = smul.u32 2, %s38
          %s400 = ssub.s32 256, 256
          %401 = vsyncadd [#allocation4], %s400
          %s402 = smul.addr %s398, 128
          %s403 = scalar_lea.hbm %s0, %s402
          %s404 = sshll.u32 [#allocation3], 4
          %s405 = int_to_ptr.vmem [resolvable:$true] %s404
          %410 = dma.hbm_to_vmem [thread:$0]  %s403, 256, %s405, [#allocation4], 128, 128, 8
        $region16: #{tpu_custom_call.1} parent=11 // pred_fallthru
          _
        // Predicated region
        $region17: #{tpu_custom_call.1} parent=11 // pred_check
          %p411 = pneg %p88
        $region18: #{tpu_custom_call.1} parent=11 // pred_check_branch
          %413 = sbr.rel (%p411) target = $region20
        $region19: #{tpu_custom_call.1} parent=11 // pred_region
          %s415 = ssub.s32 128, 128
          %416 = vsyncadd [#allocation7], %s415
          %s418 = sshll.u32 [#allocation6], 4
          %s419 = int_to_ptr.vmem [resolvable:$true] %s418
          %421 = dma.hbm_to_vmem [thread:$0]  %s1, 128, %s419, [#allocation7]
        $region20: #{tpu_custom_call.1} parent=11 // pred_fallthru
          _
        // Predicated region
        $region21: #{tpu_custom_call.1} parent=11 // pred_check
          %p422 = pneg %p109
        $region22: #{tpu_custom_call.1} parent=11 // pred_check_branch
          %424 = sbr.rel (%p422) target = $region24
        $region23: #{tpu_custom_call.1} parent=11 // pred_region
          %s426 = ssub.s32 1024, 1024
          %427 = vsyncadd [#allocation7], %s426
          %s428 = sshll.u32 [#allocation8], 4
          %s429 = int_to_ptr.vmem [resolvable:$true] %s428
          %434 = dma.hbm_to_vmem [thread:$0]  %s2, 1024, %s429, [#allocation7], 64, 64, 4
        $region24: #{tpu_custom_call.1} parent=11 // pred_fallthru
          _
        // Predicated region
        $region25: #{tpu_custom_call.1} parent=11 // pred_check
          %p435 = pneg %p130
        $region26: #{tpu_custom_call.1} parent=11 // pred_check_branch
          %437 = sbr.rel (%p435) target = $region28
        $region27: #{tpu_custom_call.1} parent=11 // pred_region
          _
        $region28: #{tpu_custom_call.1} parent=11 // pred_fallthru
          _
        // Predicated region
        $region29: #{tpu_custom_call.1} parent=11 // pred_check
          %p438 = pneg %p333
        $region30: #{tpu_custom_call.1} parent=11 // pred_check_branch
          %440 = sbr.rel (%p438) target = $region32
        $region31: #{tpu_custom_call.1} parent=11 // pred_region
          %s442 = ssub.s32 1024, 1024
          %443 = vsyncadd [#allocation16], %s442
          %s444 = sshll.u32 [#allocation15], 4
          %s445 = int_to_ptr.vmem [resolvable:$true] %s444
          %450 = dma.hbm_to_vmem [thread:$0]  %s11, 1024, %s445, [#allocation16], 64, 64, 4
        $region32: #{tpu_custom_call.1} parent=11 // pred_fallthru
          _
        // Predicated region
        $region33: #{tpu_custom_call.1} parent=11 // pred_check
          %p451 = pneg %p354
        $region34: #{tpu_custom_call.1} parent=11 // pred_check_branch
          %453 = sbr.rel (%p451) target = $region36
        $region35: #{tpu_custom_call.1} parent=11 // pred_region
          _
        $region36: #{tpu_custom_call.1} parent=11 // pred_fallthru
          _
      $region12: #{tpu_custom_call.1} parent=5 // pred_fallthru
        _
      %p454 = scmp.lt.s32.totalorder %s29, 2
      // Predicated region
      $region37: #{tpu_custom_call.1} parent=5 // pred_check
        %p455 = pneg %p454
      $region38: #{tpu_custom_call.1} parent=5 // pred_check_branch
        %457 = sbr.rel (%p455) target = $region40
      $region39: #{tpu_custom_call.1} parent=5 // pred_region
        // Predicated region
        $region41: #{tpu_custom_call.1} parent=39 // pred_check
          %p458 = pneg %p150
        $region42: #{tpu_custom_call.1} parent=39 // pred_check_branch
          %460 = sbr.rel (%p458) target = $region44
        $region43: #{tpu_custom_call.1} parent=39 // pred_region
          %s461 = sand.u32 %s29, 1
          %s462 = scalar_lea.sflag [#allocation10], %s461
          %s463 = sand.u32 %s140, 1
          %s464 = smul.addr %s463, 192
          %s465 = scalar_lea.vmem [#allocation9], %s464
          %s467 = ssub.s32 3072, 3072
          %468 = vsyncadd %s462, %s467
          %s469 = smul.addr %s37, 48
          %s470 = smul.addr %s469, 64
          %s471 = scalar_lea.hbm %s4, %s470
          %s472 = sshll.u32 %s465, 4
          %s473 = int_to_ptr.vmem [resolvable:$true] %s472
          %478 = dma.hbm_to_vmem [thread:$0]  %s471, 3072, %s473, %s462, 192, 192, 12
        $region44: #{tpu_custom_call.1} parent=39 // pred_fallthru
          _
        // Predicated region
        $region45: #{tpu_custom_call.1} parent=39 // pred_check
          %p479 = pneg %p176
        $region46: #{tpu_custom_call.1} parent=39 // pred_check_branch
          %481 = sbr.rel (%p479) target = $region48
        $region47: #{tpu_custom_call.1} parent=39 // pred_region
          %p482 = scmp.lt.s32.totalorder %s37, 1
          %s483 = scalar_select %p482, %s37, 1
          %s484 = smul.addr %s483, 3
          %s485 = scalar_lea.vmem %s5, %s484
        $region48: #{tpu_custom_call.1} parent=39 // pred_fallthru
          _
        // Predicated region
        $region49: #{tpu_custom_call.1} parent=39 // pred_check
          %p486 = pneg %p202
        $region50: #{tpu_custom_call.1} parent=39 // pred_check_branch
          %488 = sbr.rel (%p486) target = $region52
        $region51: #{tpu_custom_call.1} parent=39 // pred_region
          %s489 = sand.u32 %s29, 1
          %s490 = scalar_lea.sflag [#allocation10], %s489
          %s491 = sand.u32 %s192, 1
          %s492 = smul.addr %s491, 64
          %s493 = scalar_lea.vmem [#allocation11], %s492
          %s495 = ssub.s32 1024, 1024
          %496 = vsyncadd %s490, %s495
          %s497 = smul.addr %s37, 16
          %s498 = smul.addr %s497, 64
          %s499 = scalar_lea.hbm %s6, %s498
          %s500 = sshll.u32 %s493, 4
          %s501 = int_to_ptr.vmem [resolvable:$true] %s500
          %506 = dma.hbm_to_vmem [thread:$0]  %s499, 1024, %s501, %s490, 64, 64, 4
        $region52: #{tpu_custom_call.1} parent=39 // pred_fallthru
          _
        // Predicated region
        $region53: #{tpu_custom_call.1} parent=39 // pred_check
          %p507 = pneg %p228
        $region54: #{tpu_custom_call.1} parent=39 // pred_check_branch
          %509 = sbr.rel (%p507) target = $region56
        $region55: #{tpu_custom_call.1} parent=39 // pred_region
          %s510 = sand.u32 %s29, 1
          %s511 = scalar_lea.sflag [#allocation13], %s510
          %s512 = sand.u32 %s218, 1
          %s513 = smul.addr %s512, 64
          %s514 = scalar_lea.vmem [#allocation12], %s513
          %s516 = ssub.s32 1024, 1024
          %517 = vsyncadd %s511, %s516
          %s518 = smul.addr %s37, 16
          %s519 = smul.addr %s518, 64
          %s520 = scalar_lea.hbm %s7, %s519
          %s521 = sshll.u32 %s514, 4
          %s522 = int_to_ptr.vmem [resolvable:$true] %s521
          %527 = dma.hbm_to_vmem [thread:$0]  %s520, 1024, %s522, %s511, 64, 64, 4
        $region56: #{tpu_custom_call.1} parent=39 // pred_fallthru
          _
        // Predicated region
        $region57: #{tpu_custom_call.1} parent=39 // pred_check
          %p528 = pneg %p254
        $region58: #{tpu_custom_call.1} parent=39 // pred_check_branch
          %530 = sbr.rel (%p528) target = $region60
        $region59: #{tpu_custom_call.1} parent=39 // pred_region
          %p531 = scmp.lt.s32.totalorder %s37, 1
          %s532 = scalar_select %p531, %s37, 1
          %s533 = scalar_lea.vmem %s8, %s532
        $region60: #{tpu_custom_call.1} parent=39 // pred_fallthru
          _
        // Predicated region
        $region61: #{tpu_custom_call.1} parent=39 // pred_check
          %p534 = pneg %p280
        $region62: #{tpu_custom_call.1} parent=39 // pred_check_branch
          %536 = sbr.rel (%p534) target = $region64
        $region63: #{tpu_custom_call.1} parent=39 // pred_region
          %s537 = sand.u32 %s29, 1
          %s538 = scalar_lea.sflag [#allocation13], %s537
          %s539 = sand.u32 %s270, 1
          %s540 = smul.addr %s539, 64
          %s541 = scalar_lea.vmem [#allocation14], %s540
          %s543 = ssub.s32 1024, 1024
          %544 = vsyncadd %s538, %s543
          %s545 = smul.addr %s37, 16
          %s546 = smul.addr %s545, 64
          %s547 = scalar_lea.hbm %s9, %s546
          %s548 = sshll.u32 %s541, 4
          %s549 = int_to_ptr.vmem [resolvable:$true] %s548
          %554 = dma.hbm_to_vmem [thread:$0]  %s547, 1024, %s549, %s538, 64, 64, 4
        $region64: #{tpu_custom_call.1} parent=39 // pred_fallthru
          _
        // Predicated region
        $region65: #{tpu_custom_call.1} parent=39 // pred_check
          %p555 = pneg %p306
        $region66: #{tpu_custom_call.1} parent=39 // pred_check_branch
          %557 = sbr.rel (%p555) target = $region68
        $region67: #{tpu_custom_call.1} parent=39 // pred_region
          %p558 = scmp.lt.s32.totalorder %s37, 1
          %s559 = scalar_select %p558, %s37, 1
          %s560 = smul.addr %s559, 8
          %s561 = scalar_lea.vmem %s10, %s560
        $region68: #{tpu_custom_call.1} parent=39 // pred_fallthru
          _
      $region40: #{tpu_custom_call.1} parent=5 // pred_fallthru
        _
      %p562 = scmp.le.s32.totalorder 1, %s29
      %p563 = scmp.lt.s32.totalorder %s29, 3
      %p564 = pnand %p562, %p563
      %p565 = pneg %p564
      // Predicated region
      $region69: #{tpu_custom_call.1} parent=5 // pred_check
        _
      $region70: #{tpu_custom_call.1} parent=5 // pred_check_branch
        %567 = sbr.rel (%p564) target = $region72
      $region71: #{tpu_custom_call.1} parent=5 // pred_region
        %s568 = ssub.s32 %s29, 1
        // Predicated region
        $region73: #{tpu_custom_call.1} parent=71 // pred_check
          %p569 = pneg %p67
        $region74: #{tpu_custom_call.1} parent=71 // pred_check_branch
          %571 = sbr.rel (%p569) target = $region76
        $region75: #{tpu_custom_call.1} parent=71 // pred_region
          %572 = dma.done [#allocation4], 256
        $region76: #{tpu_custom_call.1} parent=71 // pred_fallthru
          _
        // Predicated region
        $region77: #{tpu_custom_call.1} parent=71 // pred_check
          %p573 = pneg %p88
        $region78: #{tpu_custom_call.1} parent=71 // pred_check_branch
          %575 = sbr.rel (%p573) target = $region80
        $region79: #{tpu_custom_call.1} parent=71 // pred_region
          %576 = dma.done [#allocation7], 128
        $region80: #{tpu_custom_call.1} parent=71 // pred_fallthru
          _
        // Predicated region
        $region81: #{tpu_custom_call.1} parent=71 // pred_check
          %p577 = pneg %p109
        $region82: #{tpu_custom_call.1} parent=71 // pred_check_branch
          %579 = sbr.rel (%p577) target = $region84
        $region83: #{tpu_custom_call.1} parent=71 // pred_region
          %580 = dma.done [#allocation7], 1024
        $region84: #{tpu_custom_call.1} parent=71 // pred_fallthru
          _
        %s581 = sand.u32 %s34, 1
        %s582 = scalar_lea.sflag [#allocation10], %s581
        %s583 = sand.u32 %s143, 1
        %s584 = smul.addr %s583, 192
        %s585 = scalar_lea.vmem [#allocation9], %s584
        // Predicated region
        $region85: #{tpu_custom_call.1} parent=71 // pred_check
          %p586 = pneg %p156
        $region86: #{tpu_custom_call.1} parent=71 // pred_check_branch
          %588 = sbr.rel (%p586) target = $region88
        $region87: #{tpu_custom_call.1} parent=71 // pred_region
          %589 = dma.done %s582, 3072
        $region88: #{tpu_custom_call.1} parent=71 // pred_fallthru
          _
        %s590 = sand.u32 %s34, 1
        %s591 = scalar_lea.sflag [#allocation10], %s590
        %s592 = sand.u32 %s195, 1
        %s593 = smul.addr %s592, 64
        %s594 = scalar_lea.vmem [#allocation11], %s593
        // Predicated region
        $region89: #{tpu_custom_call.1} parent=71 // pred_check
          %p595 = pneg %p208
        $region90: #{tpu_custom_call.1} parent=71 // pred_check_branch
          %597 = sbr.rel (%p595) target = $region92
        $region91: #{tpu_custom_call.1} parent=71 // pred_region
          %598 = dma.done %s591, 1024
        $region92: #{tpu_custom_call.1} parent=71 // pred_fallthru
          _
        %s599 = sand.u32 %s34, 1
        %s600 = scalar_lea.sflag [#allocation13], %s599
        %s601 = sand.u32 %s221, 1
        %s602 = smul.addr %s601, 64
        %s603 = scalar_lea.vmem [#allocation12], %s602
        // Predicated region
        $region93: #{tpu_custom_call.1} parent=71 // pred_check
          %p604 = pneg %p234
        $region94: #{tpu_custom_call.1} parent=71 // pred_check_branch
          %606 = sbr.rel (%p604) target = $region96
        $region95: #{tpu_custom_call.1} parent=71 // pred_region
          %607 = dma.done %s600, 1024
        $region96: #{tpu_custom_call.1} parent=71 // pred_fallthru
          _
        %s608 = sand.u32 %s34, 1
        %s609 = scalar_lea.sflag [#allocation13], %s608
        %s610 = sand.u32 %s273, 1
        %s611 = smul.addr %s610, 64
        %s612 = scalar_lea.vmem [#allocation14], %s611
        // Predicated region
        $region97: #{tpu_custom_call.1} parent=71 // pred_check
          %p613 = pneg %p286
        $region98: #{tpu_custom_call.1} parent=71 // pred_check_branch
          %615 = sbr.rel (%p613) target = $region100
        $region99: #{tpu_custom_call.1} parent=71 // pred_region
          %616 = dma.done %s609, 1024
        $region100: #{tpu_custom_call.1} parent=71 // pred_fallthru
          _
        // Predicated region
        $region101: #{tpu_custom_call.1} parent=71 // pred_check
          %p617 = pneg %p333
        $region102: #{tpu_custom_call.1} parent=71 // pred_check_branch
          %619 = sbr.rel (%p617) target = $region104
        $region103: #{tpu_custom_call.1} parent=71 // pred_region
          %620 = dma.done [#allocation16], 1024
        $region104: #{tpu_custom_call.1} parent=71 // pred_fallthru
          _
        %p621 = pneg %p67
        %p622 = pneg %p64
        %p623 = pneg %p88
        %p624 = pneg %p85
        %p625 = pneg %p109
        %p626 = pneg %p106
        %p627 = pneg %p130
        %p628 = pneg %p127
        %s629 = sand.u32 %s34, 1
        %s630 = scalar_lea.sflag [#allocation10], %s629
        %s631 = sand.u32 %s143, 1
        %s632 = smul.addr %s631, 192
        %s633 = scalar_lea.vmem [#allocation9], %s632
        %p634 = pneg %p156
        %p635 = pneg %p153
        %p636 = scmp.lt.s32.totalorder %s39, 1
        %s637 = scalar_select %p636, %s39, 1
        %s638 = smul.addr %s637, 3
        %s639 = scalar_lea.vmem %s5, %s638
        %p640 = pneg %p182
        %p641 = pneg %p179
        %s642 = sand.u32 %s34, 1
        %s643 = scalar_lea.sflag [#allocation10], %s642
        %s644 = sand.u32 %s195, 1
        %s645 = smul.addr %s644, 64
        %s646 = scalar_lea.vmem [#allocation11], %s645
        %p647 = pneg %p208
        %p648 = pneg %p205
        %s649 = sand.u32 %s34, 1
        %s650 = scalar_lea.sflag [#allocation13], %s649
        %s651 = sand.u32 %s221, 1
        %s652 = smul.addr %s651, 64
        %s653 = scalar_lea.vmem [#allocation12], %s652
        %p654 = pneg %p234
        %p655 = pneg %p231
        %p656 = scmp.lt.s32.totalorder %s39, 1
        %s657 = scalar_select %p656, %s39, 1
        %s658 = scalar_lea.vmem %s8, %s657
        %p659 = pneg %p260
        %p660 = pneg %p257
        %s661 = sand.u32 %s34, 1
        %s662 = scalar_lea.sflag [#allocation13], %s661
        %s663 = sand.u32 %s273, 1
        %s664 = smul.addr %s663, 64
        %s665 = scalar_lea.vmem [#allocation14], %s664
        %p666 = pneg %p286
        %p667 = pneg %p283
        %p668 = scmp.lt.s32.totalorder %s39, 1
        %s669 = scalar_select %p668, %s39, 1
        %s670 = smul.addr %s669, 8
        %s671 = scalar_lea.vmem %s10, %s670
        %p672 = pneg %p312
        %p673 = pneg %p309
        %p674 = pneg %p333
        %p675 = pneg %p330
        %p676 = pneg %p354
        %p677 = pneg %p351
        %p678 = pneg %p380
        %p679 = pneg %p377
        %s680 = smul.u32 2, %s38
        %p681 = scmp.lt.s32.totalorder %s39, 1
        %s682 = scalar_select %p681, %s39, 1
        %s683 = smul.addr %s682, 3
        %s684 = scalar_lea.vmem %s5, %s683
        %p685 = scmp.lt.s32.totalorder %s39, 1
        %s686 = scalar_select %p685, %s39, 1
        %s687 = scalar_lea.vmem %s8, %s686
        %p688 = scmp.lt.s32.totalorder %s39, 1
        %s689 = scalar_select %p688, %s39, 1
        %s690 = smul.addr %s689, 8
        %s691 = scalar_lea.vmem %s10, %s690
        %s692 = smul.u32 2, %s38
        %p694 = scmp.eq.s32.totalorder %s39, 0
        // Predicated region
        $region105: #{tpu_custom_call.1} parent=71 // pred_check
          %p695 = pneg %p694
        $region106: #{tpu_custom_call.1} parent=71 // pred_check_branch
          %697 = sbr.rel (%p695) target = $region108
        $region107: #{tpu_custom_call.1} parent=71 // pred_region
          %v698 = vld [vmem:[#allocation3] sm:$0xff]
          %v699 = vld [vmem:[#allocation3 + $0x8] sm:$0xff]
          %v700 = vpack.c.bf16 %v699, %v698
          %v701 = vld [vmem:[#allocation8] sm:$0xf]
          %v702 = vld [vmem:[#allocation8 + $0x4] sm:$0xf]
          %v703 = vld [vmem:[#allocation8 + $0x8] sm:$0xf]
          %v704 = vld [vmem:[#allocation8 + $0xc] sm:$0xf]
          %v705 = vld [vmem:[#allocation8 + $0x10] sm:$0xf]
          %v706 = vld [vmem:[#allocation8 + $0x14] sm:$0xf]
          %v707 = vld [vmem:[#allocation8 + $0x18] sm:$0xf]
          %v708 = vld [vmem:[#allocation8 + $0x1c] sm:$0xf]
          %v709 = vld [vmem:[#allocation8 + $0x20] sm:$0xf]
          %v710 = vld [vmem:[#allocation8 + $0x24] sm:$0xf]
          %v711 = vld [vmem:[#allocation8 + $0x28] sm:$0xf]
          %v712 = vld [vmem:[#allocation8 + $0x2c] sm:$0xf]
          %v713 = vld [vmem:[#allocation8 + $0x30] sm:$0xf]
          %v714 = vld [vmem:[#allocation8 + $0x34] sm:$0xf]
          %v715 = vld [vmem:[#allocation8 + $0x38] sm:$0xf]
          %v716 = vld [vmem:[#allocation8 + $0x3c] sm:$0xf]
          %v717 = vld [vmem:[%s3] sm:$0x1]
          %v719 = vlaneseq
          %v720 = vshrl.u32 %v719, 7
          %v721 = vsub.s32 0, %v720
          %v722 = vrot.slane %v717, %v721
          %v740 = vunpack.c.l.b16 %v701
          %v741 = vunpack.c.l.b16 %v702
          %v742 = vunpack.c.l.b16 %v703
          %v743 = vunpack.c.l.b16 %v704
          %v744 = vunpack.c.l.b16 %v705
          %v745 = vunpack.c.l.b16 %v706
          %v746 = vunpack.c.l.b16 %v707
          %v747 = vunpack.c.l.b16 %v708
          %v748 = vunpack.c.l.b16 %v709
          %v749 = vunpack.c.l.b16 %v710
          %v750 = vunpack.c.l.b16 %v711
          %v751 = vunpack.c.l.b16 %v712
          %v752 = vunpack.c.l.b16 %v713
          %v753 = vunpack.c.l.b16 %v714
          %v754 = vunpack.c.l.b16 %v715
          %v755 = vunpack.c.l.b16 %v716
          %v756 = vpack.c.b16 %v741, %v740
          %v757 = vpack.c.b16 %v743, %v742
          %v758 = vpack.c.b16 %v745, %v744
          %v759 = vpack.c.b16 %v747, %v746
          %v760 = vpack.c.b16 %v749, %v748
          %v761 = vpack.c.b16 %v751, %v750
          %v762 = vpack.c.b16 %v753, %v752
          %v763 = vpack.c.b16 %v755, %v754
          %772 = vmatprep.subr.bf16.mxu0 0
          %773 = vmatpush1.bf16.msra.mxu0 %v756
          %774 = vmatprep.subr.bf16.mxu0 0
          %775 = vmatpush1.bf16.msra.mxu0 %v757
          %776 = vmatprep.subr.bf16.mxu0 0
          %777 = vmatpush1.bf16.msra.mxu0 %v758
          %778 = vmatprep.subr.bf16.mxu0 0
          %779 = vmatpush1.bf16.msra.mxu0 %v759
          %780 = vmatprep.subr.bf16.mxu0 0
          %781 = vmatpush1.bf16.msra.mxu0 %v760
          %782 = vmatprep.subr.bf16.mxu0 0
          %783 = vmatpush1.bf16.msra.mxu0 %v761
          %784 = vmatprep.subr.bf16.mxu0 0
          %785 = vmatpush1.bf16.msra.mxu0 %v762
          %786 = vmatprep.subr.bf16.mxu0 0
          %787 = vmatpush1.bf16.msra.mxu0 %v763
          %788 = vmatprep.subr.bf16.mxu0 0
          %789 = vmatpush1.bf16.msra.mxu0 0
          %790 = vmatprep.subr.bf16.mxu0 0
          %791 = vmatpush1.bf16.msra.mxu0 0
          %792 = vmatprep.subr.bf16.mxu0 0
          %793 = vmatpush1.bf16.msra.mxu0 0
          %794 = vmatprep.subr.bf16.mxu0 0
          %795 = vmatpush1.bf16.msra.mxu0 0
          %796 = vmatprep.subr.bf16.mxu0 0
          %797 = vmatpush1.bf16.msra.mxu0 0
          %798 = vmatprep.subr.bf16.mxu0 0
          %799 = vmatpush1.bf16.msra.mxu0 0
          %800 = vmatprep.subr.bf16.mxu0 0
          %801 = vmatpush1.bf16.msra.mxu0 0
          %802 = vmatprep.subr.bf16.mxu0 0
          %803 = vmatpush1.bf16.msra.mxu0 0
          %804 = vmatprep.mubr.bf16.mxu0 0
          %805 = vmatmul.mubr.bf16.gmra.mrb[0].mxu0 %v700
          %v806 = vpop.f32.mrb[0].mxu0
          %v807 = vadd.f32 %v722, %v806
          %v808 = vpop.f32.mrb[0].mxu0
          %v809 = vpop.f32.mrb[0].mxu0
          %v810 = vadd.f32 %v722, %v809
          %v811 = vpop.f32.mrb[0].mxu0
          %812 = vdwg.mxu0
          %v813 = vmul.f32 %v807, 5.656854
          %v814 = vmul.f32 %v810, 5.656854
          %v815 = vld [vmem:[#allocation6] sm:$0xff]
          %v816 = vadd.f32 %v813, %v815
          %v817 = vadd.f32 %v814, %v815
          %818 = vst [vmem:[#allocation2] sm:$0xff] %v816
          %819 = vst [vmem:[#allocation2 + $0x8] sm:$0xff] %v817
        $region108: #{tpu_custom_call.1} parent=71 // pred_fallthru
          _
        %v820 = vld [vmem:[#allocation2] sm:$0xff]
        %v821 = vld [vmem:[#allocation2 + $0x8] sm:$0xff]
        %v822 = vpack.c.bf16 %v821, %v820
        %v823 = vld [vmem:[%s585] sm:$0xff]
        %v824 = vld [vmem:[%s585 + $0x8] sm:$0xf]
        %v825 = vld [vmem:[%s585 + $0xc] sm:$0xff]
        %v826 = vld [vmem:[%s585 + $0x14] sm:$0xf]
        %v827 = vld [vmem:[%s585 + $0x18] sm:$0xff]
        %v828 = vld [vmem:[%s585 + $0x20] sm:$0xf]
        %v829 = vld [vmem:[%s585 + $0x24] sm:$0xff]
        %v830 = vld [vmem:[%s585 + $0x2c] sm:$0xf]
        %v831 = vld [vmem:[%s585 + $0x30] sm:$0xff]
        %v832 = vld [vmem:[%s585 + $0x38] sm:$0xf]
        %v833 = vld [vmem:[%s585 + $0x3c] sm:$0xff]
        %v834 = vld [vmem:[%s585 + $0x44] sm:$0xf]
        %v835 = vld [vmem:[%s585 + $0x48] sm:$0xff]
        %v836 = vld [vmem:[%s585 + $0x50] sm:$0xf]
        %v837 = vld [vmem:[%s585 + $0x54] sm:$0xff]
        %v838 = vld [vmem:[%s585 + $0x5c] sm:$0xf]
        %v839 = vld [vmem:[%s585 + $0x60] sm:$0xff]
        %v840 = vld [vmem:[%s585 + $0x68] sm:$0xf]
        %v841 = vld [vmem:[%s585 + $0x6c] sm:$0xff]
        %v842 = vld [vmem:[%s585 + $0x74] sm:$0xf]
        %v843 = vld [vmem:[%s585 + $0x78] sm:$0xff]
        %v844 = vld [vmem:[%s585 + $0x80] sm:$0xf]
        %v845 = vld [vmem:[%s585 + $0x84] sm:$0xff]
        %v846 = vld [vmem:[%s585 + $0x8c] sm:$0xf]
        %v847 = vld [vmem:[%s585 + $0x90] sm:$0xff]
        %v848 = vld [vmem:[%s585 + $0x98] sm:$0xf]
        %v849 = vld [vmem:[%s585 + $0x9c] sm:$0xff]
        %v850 = vld [vmem:[%s585 + $0xa4] sm:$0xf]
        %v851 = vld [vmem:[%s585 + $0xa8] sm:$0xff]
        %v852 = vld [vmem:[%s585 + $0xb0] sm:$0xf]
        %v853 = vld [vmem:[%s585 + $0xb4] sm:$0xff]
        %v854 = vld [vmem:[%s585 + $0xbc] sm:$0xf]
        %v855 = vld [vmem:[%s684] sm:$0x7]
        %v857 = vlaneseq
        %v858 = vshrl.u32 %v857, 7
        %v859 = vsub.s32 0, %v858
        %v860 = vrot.slane %v855, %v859
        %v861 = vlaneseq
        %v862 = vshrl.u32 %v861, 7
        %v863 = vsub.s32 1, %v862
        %v864 = vrot.slane %v855, %v863
        %v865 = vlaneseq
        %v866 = vshrl.u32 %v865, 7
        %v867 = vsub.s32 2, %v866
        %v868 = vrot.slane %v855, %v867
        %v904 = vunpack.c.l.b16 %v823
        %v905 = vunpack.c.h.b16 %v823
        %v906 = vunpack.c.l.b16 %v824
        %v907 = vunpack.c.l.b16 %v825
        %v908 = vunpack.c.h.b16 %v825
        %v909 = vunpack.c.l.b16 %v826
        %v910 = vunpack.c.l.b16 %v827
        %v911 = vunpack.c.h.b16 %v827
        %v912 = vunpack.c.l.b16 %v828
        %v913 = vunpack.c.l.b16 %v829
        %v914 = vunpack.c.h.b16 %v829
        %v915 = vunpack.c.l.b16 %v830
        %v916 = vunpack.c.l.b16 %v831
        %v917 = vunpack.c.h.b16 %v831
        %v918 = vunpack.c.l.b16 %v832
        %v919 = vunpack.c.l.b16 %v833
        %v920 = vunpack.c.h.b16 %v833
        %v921 = vunpack.c.l.b16 %v834
        %v922 = vunpack.c.l.b16 %v835
        %v923 = vunpack.c.h.b16 %v835
        %v924 = vunpack.c.l.b16 %v836
        %v925 = vunpack.c.l.b16 %v837
        %v926 = vunpack.c.h.b16 %v837
        %v927 = vunpack.c.l.b16 %v838
        %v928 = vunpack.c.l.b16 %v839
        %v929 = vunpack.c.h.b16 %v839
        %v930 = vunpack.c.l.b16 %v840
        %v931 = vunpack.c.l.b16 %v841
        %v932 = vunpack.c.h.b16 %v841
        %v933 = vunpack.c.l.b16 %v842
        %v934 = vunpack.c.l.b16 %v843
        %v935 = vunpack.c.h.b16 %v843
        %v936 = vunpack.c.l.b16 %v844
        %v937 = vunpack.c.l.b16 %v845
        %v938 = vunpack.c.h.b16 %v845
        %v939 = vunpack.c.l.b16 %v846
        %v940 = vunpack.c.l.b16 %v847
        %v941 = vunpack.c.h.b16 %v847
        %v942 = vunpack.c.l.b16 %v848
        %v943 = vunpack.c.l.b16 %v849
        %v944 = vunpack.c.h.b16 %v849
        %v945 = vunpack.c.l.b16 %v850
        %v946 = vunpack.c.l.b16 %v851
        %v947 = vunpack.c.h.b16 %v851
        %v948 = vunpack.c.l.b16 %v852
        %v949 = vunpack.c.l.b16 %v853
        %v950 = vunpack.c.h.b16 %v853
        %v951 = vunpack.c.l.b16 %v854
        %v952 = vpack.c.b16 %v907, %v904
        %v953 = vpack.c.b16 %v908, %v905
        %v954 = vpack.c.b16 %v909, %v906
        %v955 = vpack.c.b16 %v913, %v910
        %v956 = vpack.c.b16 %v914, %v911
        %v957 = vpack.c.b16 %v915, %v912
        %v958 = vpack.c.b16 %v919, %v916
        %v959 = vpack.c.b16 %v920, %v917
        %v960 = vpack.c.b16 %v921, %v918
        %v961 = vpack.c.b16 %v925, %v922
        %v962 = vpack.c.b16 %v926, %v923
        %v963 = vpack.c.b16 %v927, %v924
        %v964 = vpack.c.b16 %v931, %v928
        %v965 = vpack.c.b16 %v932, %v929
        %v966 = vpack.c.b16 %v933, %v930
        %v967 = vpack.c.b16 %v937, %v934
        %v968 = vpack.c.b16 %v938, %v935
        %v969 = vpack.c.b16 %v939, %v936
        %v970 = vpack.c.b16 %v943, %v940
        %v971 = vpack.c.b16 %v944, %v941
        %v972 = vpack.c.b16 %v945, %v942
        %v973 = vpack.c.b16 %v949, %v946
        %v974 = vpack.c.b16 %v950, %v947
        %v975 = vpack.c.b16 %v951, %v948
        %1000 = vmatprep.subr.bf16.mxu0 %v953
        %1001 = vmatpush1.bf16.msra.mxu0 %v952
        %1002 = vmatprep.subr.bf16.mxu0 %v956
        %1003 = vmatpush1.bf16.msra.mxu0 %v955
        %1004 = vmatprep.subr.bf16.mxu0 %v959
        %1005 = vmatpush1.bf16.msra.mxu0 %v958
        %1006 = vmatprep.subr.bf16.mxu0 %v962
        %1007 = vmatpush1.bf16.msra.mxu0 %v961
        %1008 = vmatprep.subr.bf16.mxu0 %v965
        %1009 = vmatpush1.bf16.msra.mxu0 %v964
        %1010 = vmatprep.subr.bf16.mxu0 %v968
        %1011 = vmatpush1.bf16.msra.mxu0 %v967
        %1012 = vmatprep.subr.bf16.mxu0 %v971
        %1013 = vmatpush1.bf16.msra.mxu0 %v970
        %1014 = vmatprep.subr.bf16.mxu0 %v974
        %1015 = vmatpush1.bf16.msra.mxu0 %v973
        %1016 = vmatprep.subr.bf16.mxu0 0
        %1017 = vmatpush1.bf16.msra.mxu0 0
        %1018 = vmatprep.subr.bf16.mxu0 0
        %1019 = vmatpush1.bf16.msra.mxu0 0
        %1020 = vmatprep.subr.bf16.mxu0 0
        %1021 = vmatpush1.bf16.msra.mxu0 0
        %1022 = vmatprep.subr.bf16.mxu0 0
        %1023 = vmatpush1.bf16.msra.mxu0 0
        %1024 = vmatprep.subr.bf16.mxu0 0
        %1025 = vmatpush1.bf16.msra.mxu0 0
        %1026 = vmatprep.subr.bf16.mxu0 0
        %1027 = vmatpush1.bf16.msra.mxu0 0
        %1028 = vmatprep.subr.bf16.mxu0 0
        %1029 = vmatpush1.bf16.msra.mxu0 0
        %1030 = vmatprep.subr.bf16.mxu0 0
        %1031 = vmatpush1.bf16.msra.mxu0 0
        %1032 = vmatprep.mubr.bf16.mxu0 0
        %1033 = vmatmul.mubr.bf16.gmra.mrb[0].mxu0 %v822
        %v1034 = vpop.f32.mrb[0].mxu0
        %v1035 = vadd.f32 %v860, %v1034
        %v1036 = vpop.f32.mrb[0].mxu0
        %v1037 = vadd.f32 %v864, %v1036
        %v1038 = vpop.f32.mrb[0].mxu0
        %v1039 = vadd.f32 %v860, %v1038
        %v1040 = vpop.f32.mrb[0].mxu0
        %v1041 = vadd.f32 %v864, %v1040
        %1042 = vdwg.mxu0
        %1043 = vmatprep.subr.bf16.mxu0 0
        %1044 = vmatpush1.bf16.msra.mxu0 %v954
        %1045 = vmatprep.subr.bf16.mxu0 0
        %1046 = vmatpush1.bf16.msra.mxu0 %v957
        %1047 = vmatprep.subr.bf16.mxu0 0
        %1048 = vmatpush1.bf16.msra.mxu0 %v960
        %1049 = vmatprep.subr.bf16.mxu0 0
        %1050 = vmatpush1.bf16.msra.mxu0 %v963
        %1051 = vmatprep.subr.bf16.mxu0 0
        %1052 = vmatpush1.bf16.msra.mxu0 %v966
        %1053 = vmatprep.subr.bf16.mxu0 0
        %1054 = vmatpush1.bf16.msra.mxu0 %v969
        %1055 = vmatprep.subr.bf16.mxu0 0
        %1056 = vmatpush1.bf16.msra.mxu0 %v972
        %1057 = vmatprep.subr.bf16.mxu0 0
        %1058 = vmatpush1.bf16.msra.mxu0 %v975
        %1059 = vmatprep.subr.bf16.mxu0 0
        %1060 = vmatpush1.bf16.msra.mxu0 0
        %1061 = vmatprep.subr.bf16.mxu0 0
        %1062 = vmatpush1.bf16.msra.mxu0 0
        %1063 = vmatprep.subr.bf16.mxu0 0
        %1064 = vmatpush1.bf16.msra.mxu0 0
        %1065 = vmatprep.subr.bf16.mxu0 0
        %1066 = vmatpush1.bf16.msra.mxu0 0
        %1067 = vmatprep.subr.bf16.mxu0 0
        %1068 = vmatpush1.bf16.msra.mxu0 0
        %1069 = vmatprep.subr.bf16.mxu0 0
        %1070 = vmatpush1.bf16.msra.mxu0 0
        %1071 = vmatprep.subr.bf16.mxu0 0
        %1072 = vmatpush1.bf16.msra.mxu0 0
        %1073 = vmatprep.subr.bf16.mxu0 0
        %1074 = vmatpush1.bf16.msra.mxu0 0
        %1075 = vmatprep.mubr.bf16.mxu0 0
        %1076 = vmatmul.mubr.bf16.gmra.mrb[0].mxu0 %v822
        %v1077 = vpop.f32.mrb[0].mxu0
        %v1078 = vadd.f32 %v868, %v1077
        %v1079 = vpop.f32.mrb[0].mxu0
        %v1080 = vpop.f32.mrb[0].mxu0
        %v1081 = vadd.f32 %v868, %v1080
        %v1082 = vpop.f32.mrb[0].mxu0
        %1083 = vdwg.mxu0
        %v1084 = vpack.c.bf16 %v1035, %v1035
        %v1085 = vpack.c.bf16 %v1039, %v1039
        %v1086 = vpack.c.bf16 %v1037, %v1037
        %v1087 = vpack.c.bf16 %v1041, %v1041
        %v1088 = vpack.c.bf16 %v1078, %v1078
        %v1089 = vpack.c.bf16 %v1081, %v1081
        %1090 = vmatprep.subr.bf16.mxu0 0
        %1091 = vmatpush1.bf16.xpose.msra.mxu0 %v1086
        %1092 = vmatprep.subr.bf16.mxu0 0
        %1093 = vmatpush1.bf16.xpose.msra.mxu0 0
        %1094 = vmatprep.subr.bf16.mxu0 0
        %1095 = vmatpush1.bf16.xpose.msra.mxu0 0
        %1096 = vmatprep.subr.bf16.mxu0 0
        %1097 = vmatpush1.bf16.xpose.msra.mxu0 0
        %1098 = vmatprep.subr.bf16.mxu0 0
        %1099 = vmatpush1.bf16.xpose.msra.mxu0 0
        %1100 = vmatprep.subr.bf16.mxu0 0
        %1101 = vmatpush1.bf16.xpose.msra.mxu0 0
        %1102 = vmatprep.subr.bf16.mxu0 0
        %1103 = vmatpush1.bf16.xpose.msra.mxu0 0
        %1104 = vmatprep.subr.bf16.mxu0 0
        %1105 = vmatpush1.bf16.xpose.msra.mxu0 0
        %1106 = vmatprep.subr.bf16.mxu0 0
        %1107 = vmatpush1.bf16.xpose.msra.mxu0 0
        %1108 = vmatprep.subr.bf16.mxu0 0
        %1109 = vmatpush1.bf16.xpose.msra.mxu0 0
        %1110 = vmatprep.subr.bf16.mxu0 0
        %1111 = vmatpush1.bf16.xpose.msra.mxu0 0
        %1112 = vmatprep.subr.bf16.mxu0 0
        %1113 = vmatpush1.bf16.xpose.msra.mxu0 0
        %1114 = vmatprep.subr.bf16.mxu0 0
        %1115 = vmatpush1.bf16.xpose.msra.mxu0 0
        %1116 = vmatprep.subr.bf16.mxu0 0
        %1117 = vmatpush1.bf16.xpose.msra.mxu0 0
        %1118 = vmatprep.subr.bf16.mxu0 0
        %1119 = vmatpush1.bf16.xpose.msra.mxu0 0
        %1120 = vmatprep.subr.bf16.mxu0 0
        %1121 = vmatpush1.bf16.xpose.msra.mxu0 0
        %1122 = vmatprep.mubr.bf16.mxu0 0
        %1123 = vmatmul.mubr.bf16.gmra.mrb[0].mxu0 %v1084
        %v1124 = vpop.f32.mrb[0].mxu0
        %v1125 = vadd.f32 0.0, %v1124
        %v1126 = vpop.f32.mrb[0].mxu0
        %v1127 = vpop.f32.mrb[0].mxu0
        %v1128 = vpop.f32.mrb[0].mxu0
        %1129 = vdwg.mxu0
        %1130 = vmatprep.subr.bf16.mxu0 0
        %1131 = vmatpush1.bf16.xpose.msra.mxu0 %v1087
        %1132 = vmatprep.subr.bf16.mxu0 0
        %1133 = vmatpush1.bf16.xpose.msra.mxu0 0
        %1134 = vmatprep.subr.bf16.mxu0 0
        %1135 = vmatpush1.bf16.xpose.msra.mxu0 0
        %1136 = vmatprep.subr.bf16.mxu0 0
        %1137 = vmatpush1.bf16.xpose.msra.mxu0 0
        %1138 = vmatprep.subr.bf16.mxu0 0
        %1139 = vmatpush1.bf16.xpose.msra.mxu0 0
        %1140 = vmatprep.subr.bf16.mxu0 0
        %1141 = vmatpush1.bf16.xpose.msra.mxu0 0
        %1142 = vmatprep.subr.bf16.mxu0 0
        %1143 = vmatpush1.bf16.xpose.msra.mxu0 0
        %1144 = vmatprep.subr.bf16.mxu0 0
        %1145 = vmatpush1.bf16.xpose.msra.mxu0 0
        %1146 = vmatprep.subr.bf16.mxu0 0
        %1147 = vmatpush1.bf16.xpose.msra.mxu0 0
        %1148 = vmatprep.subr.bf16.mxu0 0
        %1149 = vmatpush1.bf16.xpose.msra.mxu0 0
        %1150 = vmatprep.subr.bf16.mxu0 0
        %1151 = vmatpush1.bf16.xpose.msra.mxu0 0
        %1152 = vmatprep.subr.bf16.mxu0 0
        %1153 = vmatpush1.bf16.xpose.msra.mxu0 0
        %1154 = vmatprep.subr.bf16.mxu0 0
        %1155 = vmatpush1.bf16.xpose.msra.mxu0 0
        %1156 = vmatprep.subr.bf16.mxu0 0
        %1157 = vmatpush1.bf16.xpose.msra.mxu0 0
        %1158 = vmatprep.subr.bf16.mxu0 0
        %1159 = vmatpush1.bf16.xpose.msra.mxu0 0
        %1160 = vmatprep.subr.bf16.mxu0 0
        %1161 = vmatpush1.bf16.xpose.msra.mxu0 0
        %1162 = vmatprep.mubr.bf16.mxu0 0
        %1163 = vmatmul.mubr.bf16.gmra.mrb[0].mxu0 %v1085
        %v1164 = vpop.f32.mrb[0].mxu0
        %v1165 = vadd.f32 0.0, %v1164
        %v1166 = vpop.f32.mrb[0].mxu0
        %v1167 = vpop.f32.mrb[0].mxu0
        %v1168 = vpop.f32.mrb[0].mxu0
        %1169 = vdwg.mxu0
        %v1170 = vmul.f32 %v1125, 0.17677669
        %v1171 = vmul.f32 %v1165, 0.17677669
        %vm1172 = vcmask 64512
        %v1173 = vsel %vm1172, %v1170, -inf
        %1174 = vmax.xlane.f32.xlu0 %v1173
        %v1175 = vpop.xlane.xlu0 %1174
        %v1176 = vsel %vm1172, %v1171, -inf
        %1177 = vmax.xlane.f32.xlu0 %v1176
        %v1178 = vpop.xlane.xlu0 %1177
        %v1179 = vsub.f32 %v1170, %v1175
        %v1180 = vsub.f32 %v1171, %v1178
        %v1181 = vmul.f32 %v1179, 1.442695
        %v1182 = vpow.pop %v1181
        %v1183 = vmul.f32 %v1180, 1.442695
        %v1184 = vpow.pop %v1183
        %v1185 = vsel %vm1172, %v1182, 0.0
        %1186 = vadd.xlane.f32.xlu0 %v1185
        %v1187 = vpop.xlane.xlu0 %1186
        %v1188 = vsel %vm1172, %v1184, 0.0
        %1189 = vadd.xlane.f32.xlu0 %v1188
        %v1190 = vpop.xlane.xlu0 %1189
        %v1191 = vrcp.pop %v1187
        %v1192 = vrcp.pop %v1190
        %v1193 = vmul.f32 %v1182, %v1191
        %v1194 = vmul.f32 %v1184, %v1192
        %v1195 = vpack.c.bf16 %v1193, %v1193
        %v1196 = vpack.c.bf16 %v1194, %v1194
        %v1198 = vsel %vm1172, %v1195, 0
        %vm1200 = vcmask 1043456
        %v1202 = vsel %vm1200, %v1088, 0
        %1204 = vmatprep.subr.bf16.mxu0 0
        %1205 = vmatpush1.bf16.msra.mxu0 %v1202
        %1206 = vmatprep.subr.bf16.mxu0 0
        %1207 = vmatpush1.bf16.msra.mxu0 0
        %1208 = vmatprep.subr.bf16.mxu0 0
        %1209 = vmatpush1.bf16.msra.mxu0 0
        %1210 = vmatprep.subr.bf16.mxu0 0
        %1211 = vmatpush1.bf16.msra.mxu0 0
        %1212 = vmatprep.subr.bf16.mxu0 0
        %1213 = vmatpush1.bf16.msra.mxu0 0
        %1214 = vmatprep.subr.bf16.mxu0 0
        %1215 = vmatpush1.bf16.msra.mxu0 0
        %1216 = vmatprep.subr.bf16.mxu0 0
        %1217 = vmatpush1.bf16.msra.mxu0 0
        %1218 = vmatprep.subr.bf16.mxu0 0
        %1219 = vmatpush1.bf16.msra.mxu0 0
        %1220 = vmatprep.subr.bf16.mxu0 0
        %1221 = vmatpush1.bf16.msra.mxu0 0
        %1222 = vmatprep.subr.bf16.mxu0 0
        %1223 = vmatpush1.bf16.msra.mxu0 0
        %1224 = vmatprep.subr.bf16.mxu0 0
        %1225 = vmatpush1.bf16.msra.mxu0 0
        %1226 = vmatprep.subr.bf16.mxu0 0
        %1227 = vmatpush1.bf16.msra.mxu0 0
        %1228 = vmatprep.subr.bf16.mxu0 0
        %1229 = vmatpush1.bf16.msra.mxu0 0
        %1230 = vmatprep.subr.bf16.mxu0 0
        %1231 = vmatpush1.bf16.msra.mxu0 0
        %1232 = vmatprep.subr.bf16.mxu0 0
        %1233 = vmatpush1.bf16.msra.mxu0 0
        %1234 = vmatprep.subr.bf16.mxu0 0
        %1235 = vmatpush1.bf16.msra.mxu0 0
        %1236 = vmatprep.mubr.bf16.mxu0 0
        %1237 = vmatmul.mubr.bf16.gmra.mrb[0].mxu0 %v1198
        %v1238 = vpop.f32.mrb[0].mxu0
        %v1239 = vadd.f32 0.0, %v1238
        %v1240 = vpop.f32.mrb[0].mxu0
        %v1241 = vpop.f32.mrb[0].mxu0
        %v1242 = vpop.f32.mrb[0].mxu0
        %1243 = vdwg.mxu0
        %v1245 = vsel %vm1172, %v1196, 0
        %v1248 = vsel %vm1200, %v1089, 0
        %1250 = vmatprep.subr.bf16.mxu0 0
        %1251 = vmatpush1.bf16.msra.mxu0 %v1248
        %1252 = vmatprep.subr.bf16.mxu0 0
        %1253 = vmatpush1.bf16.msra.mxu0 0
        %1254 = vmatprep.subr.bf16.mxu0 0
        %1255 = vmatpush1.bf16.msra.mxu0 0
        %1256 = vmatprep.subr.bf16.mxu0 0
        %1257 = vmatpush1.bf16.msra.mxu0 0
        %1258 = vmatprep.subr.bf16.mxu0 0
        %1259 = vmatpush1.bf16.msra.mxu0 0
        %1260 = vmatprep.subr.bf16.mxu0 0
        %1261 = vmatpush1.bf16.msra.mxu0 0
        %1262 = vmatprep.subr.bf16.mxu0 0
        %1263 = vmatpush1.bf16.msra.mxu0 0
        %1264 = vmatprep.subr.bf16.mxu0 0
        %1265 = vmatpush1.bf16.msra.mxu0 0
        %1266 = vmatprep.subr.bf16.mxu0 0
        %1267 = vmatpush1.bf16.msra.mxu0 0
        %1268 = vmatprep.subr.bf16.mxu0 0
        %1269 = vmatpush1.bf16.msra.mxu0 0
        %1270 = vmatprep.subr.bf16.mxu0 0
        %1271 = vmatpush1.bf16.msra.mxu0 0
        %1272 = vmatprep.subr.bf16.mxu0 0
        %1273 = vmatpush1.bf16.msra.mxu0 0
        %1274 = vmatprep.subr.bf16.mxu0 0
        %1275 = vmatpush1.bf16.msra.mxu0 0
        %1276 = vmatprep.subr.bf16.mxu0 0
        %1277 = vmatpush1.bf16.msra.mxu0 0
        %1278 = vmatprep.subr.bf16.mxu0 0
        %1279 = vmatpush1.bf16.msra.mxu0 0
        %1280 = vmatprep.subr.bf16.mxu0 0
        %1281 = vmatpush1.bf16.msra.mxu0 0
        %1282 = vmatprep.mubr.bf16.mxu0 0
        %1283 = vmatmul.mubr.bf16.gmra.mrb[0].mxu0 %v1245
        %v1284 = vpop.f32.mrb[0].mxu0
        %v1285 = vadd.f32 0.0, %v1284
        %v1286 = vpop.f32.mrb[0].mxu0
        %v1287 = vpop.f32.mrb[0].mxu0
        %v1288 = vpop.f32.mrb[0].mxu0
        %1289 = vdwg.mxu0
        %v1290 = vld [vmem:[%s691] sm:$0xff]
        %v1291 = vpack.c.bf16 %v1285, %v1239
        %v1292 = vld [vmem:[%s594] sm:$0xf]
        %v1293 = vld [vmem:[%s594 + $0x4] sm:$0xf]
        %v1294 = vld [vmem:[%s594 + $0x8] sm:$0xf]
        %v1295 = vld [vmem:[%s594 + $0xc] sm:$0xf]
        %v1296 = vld [vmem:[%s594 + $0x10] sm:$0xf]
        %v1297 = vld [vmem:[%s594 + $0x14] sm:$0xf]
        %v1298 = vld [vmem:[%s594 + $0x18] sm:$0xf]
        %v1299 = vld [vmem:[%s594 + $0x1c] sm:$0xf]
        %v1300 = vld [vmem:[%s594 + $0x20] sm:$0xf]
        %v1301 = vld [vmem:[%s594 + $0x24] sm:$0xf]
        %v1302 = vld [vmem:[%s594 + $0x28] sm:$0xf]
        %v1303 = vld [vmem:[%s594 + $0x2c] sm:$0xf]
        %v1304 = vld [vmem:[%s594 + $0x30] sm:$0xf]
        %v1305 = vld [vmem:[%s594 + $0x34] sm:$0xf]
        %v1306 = vld [vmem:[%s594 + $0x38] sm:$0xf]
        %v1307 = vld [vmem:[%s594 + $0x3c] sm:$0xf]
        %v1308 = vlaneseq
        %v1309 = vshrl.u32 %v1308, 7
        %v1310 = vsub.s32 0, %v1309
        %v1311 = vrot.slane %v1290, %v1310
        %v1328 = vunpack.c.l.b16 %v1292
        %v1329 = vunpack.c.l.b16 %v1293
        %v1330 = vunpack.c.l.b16 %v1294
        %v1331 = vunpack.c.l.b16 %v1295
        %v1332 = vunpack.c.l.b16 %v1296
        %v1333 = vunpack.c.l.b16 %v1297
        %v1334 = vunpack.c.l.b16 %v1298
        %v1335 = vunpack.c.l.b16 %v1299
        %v1336 = vunpack.c.l.b16 %v1300
        %v1337 = vunpack.c.l.b16 %v1301
        %v1338 = vunpack.c.l.b16 %v1302
        %v1339 = vunpack.c.l.b16 %v1303
        %v1340 = vunpack.c.l.b16 %v1304
        %v1341 = vunpack.c.l.b16 %v1305
        %v1342 = vunpack.c.l.b16 %v1306
        %v1343 = vunpack.c.l.b16 %v1307
        %v1344 = vpack.c.b16 %v1329, %v1328
        %v1345 = vpack.c.b16 %v1331, %v1330
        %v1346 = vpack.c.b16 %v1333, %v1332
        %v1347 = vpack.c.b16 %v1335, %v1334
        %v1348 = vpack.c.b16 %v1337, %v1336
        %v1349 = vpack.c.b16 %v1339, %v1338
        %v1350 = vpack.c.b16 %v1341, %v1340
        %v1351 = vpack.c.b16 %v1343, %v1342
        %1360 = vmatprep.subr.bf16.mxu0 0
        %1361 = vmatpush1.bf16.msra.mxu0 %v1344
        %1362 = vmatprep.subr.bf16.mxu0 0
        %1363 = vmatpush1.bf16.msra.mxu0 %v1345
        %1364 = vmatprep.subr.bf16.mxu0 0
        %1365 = vmatpush1.bf16.msra.mxu0 %v1346
        %1366 = vmatprep.subr.bf16.mxu0 0
        %1367 = vmatpush1.bf16.msra.mxu0 %v1347
        %1368 = vmatprep.subr.bf16.mxu0 0
        %1369 = vmatpush1.bf16.msra.mxu0 %v1348
        %1370 = vmatprep.subr.bf16.mxu0 0
        %1371 = vmatpush1.bf16.msra.mxu0 %v1349
        %1372 = vmatprep.subr.bf16.mxu0 0
        %1373 = vmatpush1.bf16.msra.mxu0 %v1350
        %1374 = vmatprep.subr.bf16.mxu0 0
        %1375 = vmatpush1.bf16.msra.mxu0 %v1351
        %1376 = vmatprep.subr.bf16.mxu0 0
        %1377 = vmatpush1.bf16.msra.mxu0 0
        %1378 = vmatprep.subr.bf16.mxu0 0
        %1379 = vmatpush1.bf16.msra.mxu0 0
        %1380 = vmatprep.subr.bf16.mxu0 0
        %1381 = vmatpush1.bf16.msra.mxu0 0
        %1382 = vmatprep.subr.bf16.mxu0 0
        %1383 = vmatpush1.bf16.msra.mxu0 0
        %1384 = vmatprep.subr.bf16.mxu0 0
        %1385 = vmatpush1.bf16.msra.mxu0 0
        %1386 = vmatprep.subr.bf16.mxu0 0
        %1387 = vmatpush1.bf16.msra.mxu0 0
        %1388 = vmatprep.subr.bf16.mxu0 0
        %1389 = vmatpush1.bf16.msra.mxu0 0
        %1390 = vmatprep.subr.bf16.mxu0 0
        %1391 = vmatpush1.bf16.msra.mxu0 0
        %1392 = vmatprep.mubr.bf16.mxu0 0
        %1393 = vmatmul.mubr.bf16.gmra.mrb[0].mxu0 %v1291
        %v1394 = vpop.f32.mrb[0].mxu0
        %v1395 = vadd.f32 %v1311, %v1394
        %v1396 = vpop.f32.mrb[0].mxu0
        %v1397 = vpop.f32.mrb[0].mxu0
        %v1398 = vadd.f32 %v1311, %v1397
        %v1399 = vpop.f32.mrb[0].mxu0
        %1400 = vdwg.mxu0
        %v1401 = vadd.f32 %v820, %v1395
        %v1402 = vadd.f32 %v821, %v1398
        %1403 = vadd.xlane.f32.xlu0 %v1401
        %v1404 = vpop.xlane.xlu0 %1403
        %1405 = vadd.xlane.f32.xlu0 %v1402
        %v1406 = vpop.xlane.xlu0 %1405
        %v1407 = vmul.f32 %v1404, 0.03125
        %v1408 = vmul.f32 %v1406, 0.03125
        %v1409 = vmul.f32 %v1401, %v1401
        %v1410 = vmul.f32 %v1402, %v1402
        %1411 = vadd.xlane.f32.xlu0 %v1409
        %v1412 = vpop.xlane.xlu0 %1411
        %1413 = vadd.xlane.f32.xlu0 %v1410
        %v1414 = vpop.xlane.xlu0 %1413
        %v1415 = vmul.f32 %v1412, 0.03125
        %v1416 = vmul.f32 %v1414, 0.03125
        %v1417 = vmul.f32 %v1407, %v1407
        %v1418 = vmul.f32 %v1408, %v1408
        %v1419 = vsub.f32 %v1415, %v1417
        %v1420 = vsub.f32 %v1416, %v1418
        %v1421 = vsub.f32 %v1401, %v1407
        %v1422 = vsub.f32 %v1402, %v1408
        %v1423 = vadd.f32 %v1419, 1e-05
        %v1424 = vadd.f32 %v1420, 1e-05
        %v1425 = vrsqrt.pop %v1423
        %v1426 = vrsqrt.pop %v1424
        %v1427 = vmul.f32 %v1421, %v1425
        %v1428 = vmul.f32 %v1422, %v1426
        %v1429 = vlaneseq
        %v1430 = vshrl.u32 %v1429, 7
        %v1431 = vsub.s32 1, %v1430
        %v1432 = vrot.slane %v1290, %v1431
        %v1433 = vmul.f32 %v1427, %v1432
        %v1434 = vmul.f32 %v1428, %v1432
        %v1435 = vlaneseq
        %v1436 = vshrl.u32 %v1435, 7
        %v1437 = vsub.s32 2, %v1436
        %v1438 = vrot.slane %v1290, %v1437
        %v1439 = vadd.f32 %v1433, %v1438
        %v1440 = vadd.f32 %v1434, %v1438
        %v1441 = vpack.c.bf16 %v1440, %v1439
        %v1442 = vld [vmem:[%s603] sm:$0xf]
        %v1443 = vld [vmem:[%s603 + $0x4] sm:$0xf]
        %v1444 = vld [vmem:[%s603 + $0x8] sm:$0xf]
        %v1445 = vld [vmem:[%s603 + $0xc] sm:$0xf]
        %v1446 = vld [vmem:[%s603 + $0x10] sm:$0xf]
        %v1447 = vld [vmem:[%s603 + $0x14] sm:$0xf]
        %v1448 = vld [vmem:[%s603 + $0x18] sm:$0xf]
        %v1449 = vld [vmem:[%s603 + $0x1c] sm:$0xf]
        %v1450 = vld [vmem:[%s603 + $0x20] sm:$0xf]
        %v1451 = vld [vmem:[%s603 + $0x24] sm:$0xf]
        %v1452 = vld [vmem:[%s603 + $0x28] sm:$0xf]
        %v1453 = vld [vmem:[%s603 + $0x2c] sm:$0xf]
        %v1454 = vld [vmem:[%s603 + $0x30] sm:$0xf]
        %v1455 = vld [vmem:[%s603 + $0x34] sm:$0xf]
        %v1456 = vld [vmem:[%s603 + $0x38] sm:$0xf]
        %v1457 = vld [vmem:[%s603 + $0x3c] sm:$0xf]
        %v1458 = vld [vmem:[%s687] sm:$0x1]
        %v1460 = vlaneseq
        %v1461 = vshrl.u32 %v1460, 7
        %v1462 = vsub.s32 0, %v1461
        %v1463 = vrot.slane %v1458, %v1462
        %v1481 = vunpack.c.l.b16 %v1442
        %v1482 = vunpack.c.l.b16 %v1443
        %v1483 = vunpack.c.l.b16 %v1444
        %v1484 = vunpack.c.l.b16 %v1445
        %v1485 = vunpack.c.l.b16 %v1446
        %v1486 = vunpack.c.l.b16 %v1447
        %v1487 = vunpack.c.l.b16 %v1448
        %v1488 = vunpack.c.l.b16 %v1449
        %v1489 = vunpack.c.l.b16 %v1450
        %v1490 = vunpack.c.l.b16 %v1451
        %v1491 = vunpack.c.l.b16 %v1452
        %v1492 = vunpack.c.l.b16 %v1453
        %v1493 = vunpack.c.l.b16 %v1454
        %v1494 = vunpack.c.l.b16 %v1455
        %v1495 = vunpack.c.l.b16 %v1456
        %v1496 = vunpack.c.l.b16 %v1457
        %v1497 = vpack.c.b16 %v1482, %v1481
        %v1498 = vpack.c.b16 %v1484, %v1483
        %v1499 = vpack.c.b16 %v1486, %v1485
        %v1500 = vpack.c.b16 %v1488, %v1487
        %v1501 = vpack.c.b16 %v1490, %v1489
        %v1502 = vpack.c.b16 %v1492, %v1491
        %v1503 = vpack.c.b16 %v1494, %v1493
        %v1504 = vpack.c.b16 %v1496, %v1495
        %1513 = vmatprep.subr.bf16.mxu0 0
        %1514 = vmatpush1.bf16.msra.mxu0 %v1497
        %1515 = vmatprep.subr.bf16.mxu0 0
        %1516 = vmatpush1.bf16.msra.mxu0 %v1498
        %1517 = vmatprep.subr.bf16.mxu0 0
        %1518 = vmatpush1.bf16.msra.mxu0 %v1499
        %1519 = vmatprep.subr.bf16.mxu0 0
        %1520 = vmatpush1.bf16.msra.mxu0 %v1500
        %1521 = vmatprep.subr.bf16.mxu0 0
        %1522 = vmatpush1.bf16.msra.mxu0 %v1501
        %1523 = vmatprep.subr.bf16.mxu0 0
        %1524 = vmatpush1.bf16.msra.mxu0 %v1502
        %1525 = vmatprep.subr.bf16.mxu0 0
        %1526 = vmatpush1.bf16.msra.mxu0 %v1503
        %1527 = vmatprep.subr.bf16.mxu0 0
        %1528 = vmatpush1.bf16.msra.mxu0 %v1504
        %1529 = vmatprep.subr.bf16.mxu0 0
        %1530 = vmatpush1.bf16.msra.mxu0 0
        %1531 = vmatprep.subr.bf16.mxu0 0
        %1532 = vmatpush1.bf16.msra.mxu0 0
        %1533 = vmatprep.subr.bf16.mxu0 0
        %1534 = vmatpush1.bf16.msra.mxu0 0
        %1535 = vmatprep.subr.bf16.mxu0 0
        %1536 = vmatpush1.bf16.msra.mxu0 0
        %1537 = vmatprep.subr.bf16.mxu0 0
        %1538 = vmatpush1.bf16.msra.mxu0 0
        %1539 = vmatprep.subr.bf16.mxu0 0
        %1540 = vmatpush1.bf16.msra.mxu0 0
        %1541 = vmatprep.subr.bf16.mxu0 0
        %1542 = vmatpush1.bf16.msra.mxu0 0
        %1543 = vmatprep.subr.bf16.mxu0 0
        %1544 = vmatpush1.bf16.msra.mxu0 0
        %1545 = vmatprep.mubr.bf16.mxu0 0
        %1546 = vmatmul.mubr.bf16.gmra.mrb[0].mxu0 %v1441
        %v1547 = vpop.f32.mrb[0].mxu0
        %v1548 = vadd.f32 %v1463, %v1547
        %v1549 = vpop.f32.mrb[0].mxu0
        %v1550 = vpop.f32.mrb[0].mxu0
        %v1551 = vadd.f32 %v1463, %v1550
        %v1552 = vpop.f32.mrb[0].mxu0
        %1553 = vdwg.mxu0
        %v1554 = vmax.f32 %v1548, 0.0
        %v1555 = vmax.f32 %v1551, 0.0
        %v1556 = vpack.c.bf16 %v1555, %v1554
        %v1557 = vld [vmem:[%s612] sm:$0xf]
        %v1558 = vld [vmem:[%s612 + $0x4] sm:$0xf]
        %v1559 = vld [vmem:[%s612 + $0x8] sm:$0xf]
        %v1560 = vld [vmem:[%s612 + $0xc] sm:$0xf]
        %v1561 = vld [vmem:[%s612 + $0x10] sm:$0xf]
        %v1562 = vld [vmem:[%s612 + $0x14] sm:$0xf]
        %v1563 = vld [vmem:[%s612 + $0x18] sm:$0xf]
        %v1564 = vld [vmem:[%s612 + $0x1c] sm:$0xf]
        %v1565 = vld [vmem:[%s612 + $0x20] sm:$0xf]
        %v1566 = vld [vmem:[%s612 + $0x24] sm:$0xf]
        %v1567 = vld [vmem:[%s612 + $0x28] sm:$0xf]
        %v1568 = vld [vmem:[%s612 + $0x2c] sm:$0xf]
        %v1569 = vld [vmem:[%s612 + $0x30] sm:$0xf]
        %v1570 = vld [vmem:[%s612 + $0x34] sm:$0xf]
        %v1571 = vld [vmem:[%s612 + $0x38] sm:$0xf]
        %v1572 = vld [vmem:[%s612 + $0x3c] sm:$0xf]
        %v1573 = vlaneseq
        %v1574 = vshrl.u32 %v1573, 7
        %v1575 = vsub.s32 3, %v1574
        %v1576 = vrot.slane %v1290, %v1575
        %v1593 = vunpack.c.l.b16 %v1557
        %v1594 = vunpack.c.l.b16 %v1558
        %v1595 = vunpack.c.l.b16 %v1559
        %v1596 = vunpack.c.l.b16 %v1560
        %v1597 = vunpack.c.l.b16 %v1561
        %v1598 = vunpack.c.l.b16 %v1562
        %v1599 = vunpack.c.l.b16 %v1563
        %v1600 = vunpack.c.l.b16 %v1564
        %v1601 = vunpack.c.l.b16 %v1565
        %v1602 = vunpack.c.l.b16 %v1566
        %v1603 = vunpack.c.l.b16 %v1567
        %v1604 = vunpack.c.l.b16 %v1568
        %v1605 = vunpack.c.l.b16 %v1569
        %v1606 = vunpack.c.l.b16 %v1570
        %v1607 = vunpack.c.l.b16 %v1571
        %v1608 = vunpack.c.l.b16 %v1572
        %v1609 = vpack.c.b16 %v1594, %v1593
        %v1610 = vpack.c.b16 %v1596, %v1595
        %v1611 = vpack.c.b16 %v1598, %v1597
        %v1612 = vpack.c.b16 %v1600, %v1599
        %v1613 = vpack.c.b16 %v1602, %v1601
        %v1614 = vpack.c.b16 %v1604, %v1603
        %v1615 = vpack.c.b16 %v1606, %v1605
        %v1616 = vpack.c.b16 %v1608, %v1607
        %1625 = vmatprep.subr.bf16.mxu0 0
        %1626 = vmatpush1.bf16.msra.mxu0 %v1609
        %1627 = vmatprep.subr.bf16.mxu0 0
        %1628 = vmatpush1.bf16.msra.mxu0 %v1610
        %1629 = vmatprep.subr.bf16.mxu0 0
        %1630 = vmatpush1.bf16.msra.mxu0 %v1611
        %1631 = vmatprep.subr.bf16.mxu0 0
        %1632 = vmatpush1.bf16.msra.mxu0 %v1612
        %1633 = vmatprep.subr.bf16.mxu0 0
        %1634 = vmatpush1.bf16.msra.mxu0 %v1613
        %1635 = vmatprep.subr.bf16.mxu0 0
        %1636 = vmatpush1.bf16.msra.mxu0 %v1614
        %1637 = vmatprep.subr.bf16.mxu0 0
        %1638 = vmatpush1.bf16.msra.mxu0 %v1615
        %1639 = vmatprep.subr.bf16.mxu0 0
        %1640 = vmatpush1.bf16.msra.mxu0 %v1616
        %1641 = vmatprep.subr.bf16.mxu0 0
        %1642 = vmatpush1.bf16.msra.mxu0 0
        %1643 = vmatprep.subr.bf16.mxu0 0
        %1644 = vmatpush1.bf16.msra.mxu0 0
        %1645 = vmatprep.subr.bf16.mxu0 0
        %1646 = vmatpush1.bf16.msra.mxu0 0
        %1647 = vmatprep.subr.bf16.mxu0 0
        %1648 = vmatpush1.bf16.msra.mxu0 0
        %1649 = vmatprep.subr.bf16.mxu0 0
        %1650 = vmatpush1.bf16.msra.mxu0 0
        %1651 = vmatprep.subr.bf16.mxu0 0
        %1652 = vmatpush1.bf16.msra.mxu0 0
        %1653 = vmatprep.subr.bf16.mxu0 0
        %1654 = vmatpush1.bf16.msra.mxu0 0
        %1655 = vmatprep.subr.bf16.mxu0 0
        %1656 = vmatpush1.bf16.msra.mxu0 0
        %1657 = vmatprep.mubr.bf16.mxu0 0
        %1658 = vmatmul.mubr.bf16.gmra.mrb[0].mxu0 %v1556
        %v1659 = vpop.f32.mrb[0].mxu0
        %v1660 = vadd.f32 %v1576, %v1659
        %v1661 = vpop.f32.mrb[0].mxu0
        %v1662 = vpop.f32.mrb[0].mxu0
        %v1663 = vadd.f32 %v1576, %v1662
        %v1664 = vpop.f32.mrb[0].mxu0
        %1665 = vdwg.mxu0
        %v1666 = vadd.f32 %v1439, %v1660
        %v1667 = vadd.f32 %v1440, %v1663
        %1668 = vadd.xlane.f32.xlu0 %v1666
        %v1669 = vpop.xlane.xlu0 %1668
        %1670 = vadd.xlane.f32.xlu0 %v1667
        %v1671 = vpop.xlane.xlu0 %1670
        %v1672 = vmul.f32 %v1669, 0.03125
        %v1673 = vmul.f32 %v1671, 0.03125
        %v1674 = vmul.f32 %v1666, %v1666
        %v1675 = vmul.f32 %v1667, %v1667
        %1676 = vadd.xlane.f32.xlu0 %v1674
        %v1677 = vpop.xlane.xlu0 %1676
        %1678 = vadd.xlane.f32.xlu0 %v1675
        %v1679 = vpop.xlane.xlu0 %1678
        %v1680 = vmul.f32 %v1677, 0.03125
        %v1681 = vmul.f32 %v1679, 0.03125
        %v1682 = vmul.f32 %v1672, %v1672
        %v1683 = vmul.f32 %v1673, %v1673
        %v1684 = vsub.f32 %v1680, %v1682
        %v1685 = vsub.f32 %v1681, %v1683
        %v1686 = vsub.f32 %v1666, %v1672
        %v1687 = vsub.f32 %v1667, %v1673
        %v1688 = vadd.f32 %v1684, 1e-05
        %v1689 = vadd.f32 %v1685, 1e-05
        %v1690 = vrsqrt.pop %v1688
        %v1691 = vrsqrt.pop %v1689
        %v1692 = vmul.f32 %v1686, %v1690
        %v1693 = vmul.f32 %v1687, %v1691
        %v1694 = vlaneseq
        %v1695 = vshrl.u32 %v1694, 7
        %v1696 = vsub.s32 4, %v1695
        %v1697 = vrot.slane %v1290, %v1696
        %v1698 = vmul.f32 %v1692, %v1697
        %v1699 = vmul.f32 %v1693, %v1697
        %v1700 = vlaneseq
        %v1701 = vshrl.u32 %v1700, 7
        %v1702 = vsub.s32 5, %v1701
        %v1703 = vrot.slane %v1290, %v1702
        %v1704 = vadd.f32 %v1698, %v1703
        %v1705 = vadd.f32 %v1699, %v1703
        %1706 = vst [vmem:[#allocation2] sm:$0xff] %v1704
        %1707 = vst [vmem:[#allocation2 + $0x8] sm:$0xff] %v1705
        %p1708 = scmp.eq.s32.totalorder %s39, 1
        // Predicated region
        $region109: #{tpu_custom_call.1} parent=71 // pred_check
          %p1709 = pneg %p1708
        $region110: #{tpu_custom_call.1} parent=71 // pred_check_branch
          %1711 = sbr.rel (%p1709) target = $region112
        $region111: #{tpu_custom_call.1} parent=71 // pred_region
          %v1712 = vpack.c.bf16 %v1705, %v1704
          %v1713 = vld [vmem:[#allocation15] sm:$0xf]
          %v1714 = vld [vmem:[#allocation15 + $0x4] sm:$0xf]
          %v1715 = vld [vmem:[#allocation15 + $0x8] sm:$0xf]
          %v1716 = vld [vmem:[#allocation15 + $0xc] sm:$0xf]
          %v1717 = vld [vmem:[#allocation15 + $0x10] sm:$0xf]
          %v1718 = vld [vmem:[#allocation15 + $0x14] sm:$0xf]
          %v1719 = vld [vmem:[#allocation15 + $0x18] sm:$0xf]
          %v1720 = vld [vmem:[#allocation15 + $0x1c] sm:$0xf]
          %v1721 = vld [vmem:[#allocation15 + $0x20] sm:$0xf]
          %v1722 = vld [vmem:[#allocation15 + $0x24] sm:$0xf]
          %v1723 = vld [vmem:[#allocation15 + $0x28] sm:$0xf]
          %v1724 = vld [vmem:[#allocation15 + $0x2c] sm:$0xf]
          %v1725 = vld [vmem:[#allocation15 + $0x30] sm:$0xf]
          %v1726 = vld [vmem:[#allocation15 + $0x34] sm:$0xf]
          %v1727 = vld [vmem:[#allocation15 + $0x38] sm:$0xf]
          %v1728 = vld [vmem:[#allocation15 + $0x3c] sm:$0xf]
          %v1729 = vld [vmem:[%s12] sm:$0x1]
          %v1731 = vlaneseq
          %v1732 = vshrl.u32 %v1731, 7
          %v1733 = vsub.s32 0, %v1732
          %v1734 = vrot.slane %v1729, %v1733
          %v1752 = vunpack.c.l.b16 %v1713
          %v1753 = vunpack.c.l.b16 %v1714
          %v1754 = vunpack.c.l.b16 %v1715
          %v1755 = vunpack.c.l.b16 %v1716
          %v1756 = vunpack.c.l.b16 %v1717
          %v1757 = vunpack.c.l.b16 %v1718
          %v1758 = vunpack.c.l.b16 %v1719
          %v1759 = vunpack.c.l.b16 %v1720
          %v1760 = vunpack.c.l.b16 %v1721
          %v1761 = vunpack.c.l.b16 %v1722
          %v1762 = vunpack.c.l.b16 %v1723
          %v1763 = vunpack.c.l.b16 %v1724
          %v1764 = vunpack.c.l.b16 %v1725
          %v1765 = vunpack.c.l.b16 %v1726
          %v1766 = vunpack.c.l.b16 %v1727
          %v1767 = vunpack.c.l.b16 %v1728
          %v1768 = vpack.c.b16 %v1753, %v1752
          %v1769 = vpack.c.b16 %v1755, %v1754
          %v1770 = vpack.c.b16 %v1757, %v1756
          %v1771 = vpack.c.b16 %v1759, %v1758
          %v1772 = vpack.c.b16 %v1761, %v1760
          %v1773 = vpack.c.b16 %v1763, %v1762
          %v1774 = vpack.c.b16 %v1765, %v1764
          %v1775 = vpack.c.b16 %v1767, %v1766
          %1784 = vmatprep.subr.bf16.mxu0 0
          %1785 = vmatpush1.bf16.msra.mxu0 %v1768
          %1786 = vmatprep.subr.bf16.mxu0 0
          %1787 = vmatpush1.bf16.msra.mxu0 %v1769
          %1788 = vmatprep.subr.bf16.mxu0 0
          %1789 = vmatpush1.bf16.msra.mxu0 %v1770
          %1790 = vmatprep.subr.bf16.mxu0 0
          %1791 = vmatpush1.bf16.msra.mxu0 %v1771
          %1792 = vmatprep.subr.bf16.mxu0 0
          %1793 = vmatpush1.bf16.msra.mxu0 %v1772
          %1794 = vmatprep.subr.bf16.mxu0 0
          %1795 = vmatpush1.bf16.msra.mxu0 %v1773
          %1796 = vmatprep.subr.bf16.mxu0 0
          %1797 = vmatpush1.bf16.msra.mxu0 %v1774
          %1798 = vmatprep.subr.bf16.mxu0 0
          %1799 = vmatpush1.bf16.msra.mxu0 %v1775
          %1800 = vmatprep.subr.bf16.mxu0 0
          %1801 = vmatpush1.bf16.msra.mxu0 0
          %1802 = vmatprep.subr.bf16.mxu0 0
          %1803 = vmatpush1.bf16.msra.mxu0 0
          %1804 = vmatprep.subr.bf16.mxu0 0
          %1805 = vmatpush1.bf16.msra.mxu0 0
          %1806 = vmatprep.subr.bf16.mxu0 0
          %1807 = vmatpush1.bf16.msra.mxu0 0
          %1808 = vmatprep.subr.bf16.mxu0 0
          %1809 = vmatpush1.bf16.msra.mxu0 0
          %1810 = vmatprep.subr.bf16.mxu0 0
          %1811 = vmatpush1.bf16.msra.mxu0 0
          %1812 = vmatprep.subr.bf16.mxu0 0
          %1813 = vmatpush1.bf16.msra.mxu0 0
          %1814 = vmatprep.subr.bf16.mxu0 0
          %1815 = vmatpush1.bf16.msra.mxu0 0
          %1816 = vmatprep.mubr.bf16.mxu0 0
          %1817 = vmatmul.mubr.bf16.gmra.mrb[0].mxu0 %v1712
          %v1818 = vpop.f32.mrb[0].mxu0
          %v1819 = vadd.f32 %v1734, %v1818
          %v1820 = vpop.f32.mrb[0].mxu0
          %v1821 = vpop.f32.mrb[0].mxu0
          %v1822 = vadd.f32 %v1734, %v1821
          %v1823 = vpop.f32.mrb[0].mxu0
          %1824 = vdwg.mxu0
          %1825 = vst [vmem:[#allocation17] sm:$0xff] %v1819
          %1826 = vst [vmem:[#allocation17 + $0x8] sm:$0xff] %v1822
        $region112: #{tpu_custom_call.1} parent=71 // pred_fallthru
          _
        // Predicated region
        $region113: #{tpu_custom_call.1} parent=71 // pred_check
          %p1827 = pneg %p377
        $region114: #{tpu_custom_call.1} parent=71 // pred_check_branch
          %1829 = sbr.rel (%p1827) target = $region116
        $region115: #{tpu_custom_call.1} parent=71 // pred_region
          %s1830 = smul.u32 2, %s38
          %s1832 = ssub.s32 256, 256
          %1833 = vsyncadd [#allocation5], %s1832
          %s1834 = smul.addr %s1830, 128
          %s1835 = scalar_lea.hbm %s13, %s1834
          %s1836 = sshll.u32 [#allocation17], 4
          %s1837 = int_to_ptr.vmem [resolvable:$true] %s1836
          %1842 = dma.vmem_to_hbm [thread:$0]  %s1837, 256, %s1835, [#allocation5], 128, 128, 8
        $region116: #{tpu_custom_call.1} parent=71 // pred_fallthru
          _
        // Predicated region
        $region117: #{tpu_custom_call.1} parent=71 // pred_check
          %p1843 = pneg %p377
        $region118: #{tpu_custom_call.1} parent=71 // pred_check_branch
          %1845 = sbr.rel (%p1843) target = $region120
        $region119: #{tpu_custom_call.1} parent=71 // pred_region
          %1846 = dma.done [#allocation5], 256
        $region120: #{tpu_custom_call.1} parent=71 // pred_fallthru
          _
      $region72: #{tpu_custom_call.1} parent=5 // pred_fallthru
        _
      %p1847 = scmp.le.s32.totalorder 2, %s29
      // Predicated region
      $region121: #{tpu_custom_call.1} parent=5 // pred_check
        %p1848 = pneg %p1847
      $region122: #{tpu_custom_call.1} parent=5 // pred_check_branch
        %1850 = sbr.rel (%p1848) target = $region124
      $region123: #{tpu_custom_call.1} parent=5 // pred_region
        %s1851 = ssub.s32 %s29, 2
      $region124: #{tpu_custom_call.1} parent=5 // pred_fallthru
        _
    $region6: #{tpu_custom_call.1} parent=1 // loop_footer
      %s33 = sadd.s32 1, %s29
    $region7: #{tpu_custom_call.1} parent=1 // loop_footer_branch
      %28 = sbr.rel target = $region3
    $region8: #{tpu_custom_call.1} parent=1 // loop_exit
      _
    %1852 = vsyncpa [#allocation4], 1
    %s1853 = scalar_lea.sflag [#allocation4], 1
    %1854 = vsyncpa %s1853, 1
    %1855 = vsyncpa [#allocation7], 1
    %1856 = vsyncpa [#allocation10], 1
    %s1857 = scalar_lea.sflag [#allocation10], 1
    %1858 = vsyncpa %s1857, 1
    %1859 = vsyncpa [#allocation13], 1
    %s1860 = scalar_lea.sflag [#allocation13], 1
    %1861 = vsyncpa %s1860, 1
    %1862 = vsyncpa [#allocation16], 1
    %1863 = vsyncpa [#allocation5], 1
    %s1864 = scalar_lea.sflag [#allocation5], 1
    %1865 = vsyncpa %s1864, 1

</llo_original>
